<compile_context>
chip_gen: v6e
topology: v6e:2x2x1
jax: 0.10.0
libtpu: 0.0.40
codegen_flags: <defaults>
</compile_context>

<pallas_src>
import functools

import jax
import jax.numpy as jnp
from jax import lax
from jax.experimental import pallas as pl
from jax.experimental.pallas import tpu as pltpu


def _bdot(a, b):
    # bf16 MXU operands, f32 accumulation (used by the pure-JAX reference).
    return jnp.dot(a.astype(jnp.bfloat16), b.astype(jnp.bfloat16),
                   preferred_element_type=jnp.float32)


# -----------------------------------------------------------------------------
# Pallas kernel: grid = (nlayers,)  (layer-sequential, weights streamed per step)
# -----------------------------------------------------------------------------
def resgated_gcn_kernel(
    # inputs (VMEM)
    src_ref, dstc_ref, dstr_ref,      # [E,1], [E,1], [1,E] int32 edge endpoints
    h0_ref, ew_ref,                   # [N, F] bf16, [E, 1] f32
    wh_ref, bh_ref, we_ref, be_ref,   # embedding_h / embedding_e
    wabde_ref, babde_ref,             # fused [A|B|D|E]: [H,4H] bf16, [1,4H] f32 (layer l)
    cw_ref, cb_ref,                   # C: [H,H] bf16, [1,H] f32              (layer l)
    wout_ref, bout_ref,               # padded classifier: [H,CP] bf16, [1,CP] f32
    # output
    out_ref,                          # [N, CP] f32 log-softmax (padded classes)
    # scratch (persist across grid steps)
    h_ref,                            # [N, H]  f32   node state
    e_ref,                            # [E, H]  f32   edge state
    gmat_ref,                         # [2E, N] bf16  [onehot(src); onehot(dst)]
    smat_ref,                         # [N, E]  bf16  onehot(dst)^T (scatter)
    edge_ref,                         # [E, 2H] bf16  [msg | sigma] (scatter RHS)
    *, nedges: int, nnodes: int, hdim: int,
):
    l = pl.program_id(0)
    H, E, N = hdim, nedges, nnodes
    f32, bf16 = jnp.float32, jnp.bfloat16

    # ---- first grid step: embeddings + one-hot gather/scatter matrices ----
    @pl.when(l == 0)
    def _init():
        h_ref[...] = jnp.dot(h0_ref[...], wh_ref[...],
                             preferred_element_type=f32) + bh_ref[...]       # [N, H]
        e_ref[...] = ew_ref[...] * we_ref[...] + be_ref[...]                 # [E, H]

        col = lax.broadcasted_iota(jnp.int32, (E, N), 1)                     # node id per lane
        gmat_ref[0:E, :] = (col == src_ref[...]).astype(bf16)                # onehot(src)
        gmat_ref[E:2 * E, :] = (col == dstc_ref[...]).astype(bf16)           # onehot(dst)

        row = lax.broadcasted_iota(jnp.int32, (N, E), 0)                     # node id per sublane
        smat_ref[...] = (row == dstr_ref[...]).astype(bf16)                  # onehot(dst)^T

    # ---- fused node projections:  proj = [A h | B h | D h | E h]  (128-lane out) ----
    proj = jnp.dot(h_ref[...].astype(bf16), wabde_ref[...],
                   preferred_element_type=f32) + babde_ref[...]              # [N, 4H]

    # ---- gather proj rows onto edges with ONE MXU matmul (rows 0:E = src, E:2E = dst) ----
    gath = jnp.dot(gmat_ref[...], proj.astype(bf16),
                   preferred_element_type=f32)                               # [2E, 4H]
    srow = gath[0:E, :]
    drow = gath[E:2 * E, :]
    Ah = proj[:, 0:H]
    Bh_src = srow[:, H:2 * H]
    Dh_src = srow[:, 2 * H:3 * H]
    Eh_dst = drow[:, 3 * H:4 * H]

    Ce = jnp.dot(e_ref[...].astype(bf16), cw_ref[...],
                 preferred_element_type=f32) + cb_ref[...]                   # [E, H]
    e_new = Dh_src + Eh_dst + Ce
    sigma = jax.nn.sigmoid(e_new)

    # scatter-matmul RHS [msg | sigma] written with two lane sub-stores (no concat)
    edge_ref[:, 0:H] = (sigma * Bh_src).astype(bf16)
    edge_ref[:, H:2 * H] = sigma.astype(bf16)

    # ---- scatter-add over incoming edges with ONE MXU matmul: [num | den] = S @ [msg|sigma] ----
    acc = jnp.dot(smat_ref[...], edge_ref[...], preferred_element_type=f32)  # [N, 2H]
    num = acc[:, 0:H]
    den = acc[:, H:2 * H]

    h_new = Ah + num * pl.reciprocal(den + 1e-6, approx=True)

    # residual + relu (norm=None, dropout=0.0)
    h_ref[...] = h_ref[...] + jax.nn.relu(h_new)
    e_ref[...] = e_ref[...] + jax.nn.relu(e_new)

    # ---- final classifier + log_softmax (lane-dense padded class dim) ----
    @pl.when(l == pl.num_programs(0) - 1)
    def _final():
        logits = jnp.dot(h_ref[...].astype(bf16), wout_ref[...],
                         preferred_element_type=f32) + bout_ref[...]         # [N, CP]
        m = jnp.max(logits, axis=1, keepdims=True)
        z = logits - m
        lse = jnp.log(jnp.sum(jnp.exp(z), axis=1, keepdims=True))
        out_ref[...] = z - lse


# -----------------------------------------------------------------------------
# Wrapper
# -----------------------------------------------------------------------------
def resgated_gcn_forward(h0, edge_weight, src, dst, params, *, nlayers):
    f32, bf16 = jnp.float32, jnp.bfloat16
    N, F = h0.shape
    E = edge_weight.shape[0]
    H = params["wh"].shape[1]
    C = params["wout"].shape[1]
    CP = max(128, ((C + 127) // 128) * 128)      # lane-dense padded class dim

    ew = edge_weight.reshape(-1, 1).astype(f32)
    src_col = src.reshape(E, 1).astype(jnp.int32)
    dst_col = dst.reshape(E, 1).astype(jnp.int32)
    dst_row = dst.reshape(1, E).astype(jnp.int32)

    # fuse per-layer A/B/D/E into a single [L, H, 4H] bf16 weight (+ [L, 1, 4H] f32 bias)
    wabde = jnp.concatenate(
        [params["Aw"], params["Bw"], params["Dw"], params["Ew"]], axis=2).astype(bf16)
    babde = jnp.concatenate(
        [params["Ab"], params["Bb"], params["Db"], params["Eb"]], axis=2)

    # pad classifier: zero weights, -1e30 bias in pad columns (log_softmax safe)
    wout_pad = jnp.zeros((H, CP), f32).at[:, :C].set(params["wout"]).astype(bf16)
    bout_pad = jnp.full((1, CP), -1e30, f32).at[:, :C].set(params["bout"])

    inputs = (
        src_col, dst_col, dst_row,
        h0.astype(bf16), ew,
        params["wh"].astype(bf16), params["bh"], params["we"], params["be"],
        wabde, babde, params["Cw"].astype(bf16), params["Cb"],
        wout_pad, bout_pad,
    )

    cmap = lambda l: (0, 0)                       # constant (non-layer) operands
    lmap = lambda l: (l, 0, 0)                    # per-layer weight blocks

    grid_spec = pltpu.PrefetchScalarGridSpec(
        num_scalar_prefetch=0,
        grid=(nlayers,),
        in_specs=[
            pl.BlockSpec((E, 1), cmap),                 # src (column)
            pl.BlockSpec((E, 1), cmap),                 # dst (column)
            pl.BlockSpec((1, E), cmap),                 # dst (row)
            pl.BlockSpec((N, F), cmap),                 # h0
            pl.BlockSpec((E, 1), cmap),                 # edge weights
            pl.BlockSpec((F, H), cmap),                 # wh
            pl.BlockSpec((1, H), cmap),                 # bh
            pl.BlockSpec((1, H), cmap),                 # we
            pl.BlockSpec((1, H), cmap),                 # be
            pl.BlockSpec((None, H, 4 * H), lmap),       # fused [A|B|D|E] weights
            pl.BlockSpec((None, 1, 4 * H), lmap),       # fused biases
            pl.BlockSpec((None, H, H), lmap),           # C weights
            pl.BlockSpec((None, 1, H), lmap),           # C bias
            pl.BlockSpec((H, CP), cmap),                # padded classifier W
            pl.BlockSpec((1, CP), cmap),                # padded classifier b
        ],
        out_specs=pl.BlockSpec((N, CP), cmap),
        scratch_shapes=[
            pltpu.VMEM((N, H), f32),            # h state
            pltpu.VMEM((E, H), f32),            # e state
            pltpu.VMEM((2 * E, N), bf16),       # [onehot(src); onehot(dst)]
            pltpu.VMEM((N, E), bf16),           # onehot(dst)^T (scatter matrix)
            pltpu.VMEM((E, 2 * H), bf16),       # [msg | sigma]
        ],
    )

    out_pad = pl.pallas_call(
        functools.partial(resgated_gcn_kernel, nedges=E, nnodes=N, hdim=H),
        out_shape=jax.ShapeDtypeStruct((N, CP), f32),
        grid_spec=grid_spec,
        compiler_params=pltpu.CompilerParams(
            dimension_semantics=("arbitrary",),
        ),
    )(*inputs)

    return out_pad[:, :C]


# -----------------------------------------------------------------------------
# Pure-JAX reference (f32 gather/scatter, bf16 matmul operands) for correctness
# -----------------------------------------------------------------------------
def resgated_gcn_reference(h0, edge_weight, src, dst, params, *, nlayers):
    h = _bdot(h0, params["wh"]) + params["bh"]
    e = edge_weight.reshape(-1, 1) * params["we"] + params["be"]
    N, H = h.shape
    for l in range(nlayers):
        Ah = _bdot(h, params["Aw"][l]) + params["Ab"][l]
        Bh = _bdot(h, params["Bw"][l]) + params["Bb"][l]
        Dh = _bdot(h, params["Dw"][l]) + params["Db"][l]
        Eh = _bdot(h, params["Ew"][l]) + params["Eb"][l]
        Ce = _bdot(e, params["Cw"][l]) + params["Cb"][l]
        e_new = Dh[src] + Eh[dst] + Ce
        sigma = jax.nn.sigmoid(e_new)
        num = jnp.zeros((N, H), jnp.float32).at[dst].add(sigma * Bh[src])
        den = jnp.zeros((N, H), jnp.float32).at[dst].add(sigma)
        h_new = Ah + num / (den + 1e-6)
        h = h + jax.nn.relu(h_new)
        e = e + jax.nn.relu(e_new)
    logits = _bdot(h, params["wout"]) + params["bout"]
    return jax.nn.log_softmax(logits, axis=1)


# -----------------------------------------------------------------------------
# Parameter init (deterministic, synthetic)
# -----------------------------------------------------------------------------
def init_params(key, nfeat, nhid, nlayers, nclass):
    def lin(k, fan_in, fan_out):
        kw, kb = jax.random.split(k)
        s = 1.0 / jnp.sqrt(fan_in)
        w = jax.random.uniform(kw, (fan_in, fan_out), jnp.float32, -s, s)
        b = jax.random.uniform(kb, (1, fan_out), jnp.float32, -s, s)
        return w, b

    keys = jax.random.split(key, 3 + 5 * nlayers)
    params = {}
    params["wh"], params["bh"] = lin(keys[0], nfeat, nhid)
    params["we"], params["be"] = lin(keys[1], 1, nhid)
    params["wout"], params["bout"] = lin(keys[2], nhid, nclass)
    for name_i, name in enumerate("ABCDE"):
        ws, bs = [], []
        for l in range(nlayers):
            w, b = lin(keys[3 + name_i * nlayers + l], nhid, nhid)
            ws.append(w)
            bs.append(b)
        params[name + "w"] = jnp.stack(ws)       # [L, H, H]
        params[name + "b"] = jnp.stack(bs)       # [L, 1, H]
    return params


if __name__ == "__main__":
    # small synthetic problem: 32 nodes, 64 edges
    N, E = 32, 64
    nfeat, nhid, nlayers, nclass = 16, 32, 2, 8

    key = jax.random.PRNGKey(0)
    k_h, k_w, k_s, k_d, k_p = jax.random.split(key, 5)

    h0 = jax.random.normal(k_h, (N, nfeat), jnp.float32)
    edge_weight = jax.random.uniform(k_w, (E,), jnp.float32)
    src = jax.random.randint(k_s, (E,), 0, N)
    dst = jax.random.randint(k_d, (E,), 0, N)

    params = init_params(k_p, nfeat, nhid, nlayers, nclass)

    out = resgated_gcn_forward(h0, edge_weight, src, dst, params, nlayers=nlayers)
    out = jax.block_until_ready(out)

    ref = resgated_gcn_reference(h0, edge_weight, src, dst, params, nlayers=nlayers)
    assert out.shape == (N, nclass)
    assert jnp.all(jnp.isfinite(out))
    # bf16 MXU operands + bf16 one-hot gather/scatter + approx reciprocal
    # -> compare with a moderate tolerance against the f32 gather/scatter reference.
    assert jnp.allclose(out, ref, atol=2e-2, rtol=2e-2), "mismatch vs JAX reference"

    print("KERNEL_OK")
</pallas_src>

<mosaic_0001>
module attributes {stable_mosaic.version = 11 : i64} {
  func.func @resgated_gcn_kernel(%arg0: i32, %arg1: memref<64x1xi32, #tpu.memory_space<vmem>>, %arg2: memref<64x1xi32, #tpu.memory_space<vmem>>, %arg3: memref<1x64xi32, #tpu.memory_space<vmem>>, %arg4: memref<32x16xbf16, #tpu.memory_space<vmem>>, %arg5: memref<64x1xf32, #tpu.memory_space<vmem>>, %arg6: memref<16x32xbf16, #tpu.memory_space<vmem>>, %arg7: memref<1x32xf32, #tpu.memory_space<vmem>>, %arg8: memref<1x32xf32, #tpu.memory_space<vmem>>, %arg9: memref<1x32xf32, #tpu.memory_space<vmem>>, %arg10: memref<1x32x128xbf16, #tpu.memory_space<vmem>>, %arg11: memref<1x1x128xf32, #tpu.memory_space<vmem>>, %arg12: memref<1x32x32xbf16, #tpu.memory_space<vmem>>, %arg13: memref<1x1x32xf32, #tpu.memory_space<vmem>>, %arg14: memref<32x128xbf16, #tpu.memory_space<vmem>>, %arg15: memref<1x128xf32, #tpu.memory_space<vmem>>, %arg16: memref<32x128xf32, #tpu.memory_space<vmem>>, %arg17: memref<32x32xf32, #tpu.memory_space<vmem>>, %arg18: memref<64x32xf32, #tpu.memory_space<vmem>>, %arg19: memref<128x32xbf16, #tpu.memory_space<vmem>>, %arg20: memref<32x64xbf16, #tpu.memory_space<vmem>>, %arg21: memref<64x64xbf16, #tpu.memory_space<vmem>>) attributes {dimension_semantics = [#tpu.dimension_semantics<arbitrary>], iteration_bounds = array<i64: 2>, scalar_prefetch = 0 : i64, scratch_operands = 5 : i64, tpu.core_type = #tpu.core_type<tc>, window_params = [{pipeline_mode = #tpu.pipeline_mode<synchronous>, transform_indices = @transform_0, window_bounds = array<i64: 64, 1>}, {pipeline_mode = #tpu.pipeline_mode<synchronous>, transform_indices = @transform_1, window_bounds = array<i64: 64, 1>}, {pipeline_mode = #tpu.pipeline_mode<synchronous>, transform_indices = @transform_2, window_bounds = array<i64: 1, 64>}, {pipeline_mode = #tpu.pipeline_mode<synchronous>, transform_indices = @transform_3, window_bounds = array<i64: 32, 16>}, {pipeline_mode = #tpu.pipeline_mode<synchronous>, transform_indices = @transform_4, window_bounds = array<i64: 64, 1>}, {pipeline_mode = #tpu.pipeline_mode<synchronous>, transform_indices = @transform_5, window_bounds = array<i64: 16, 32>}, {pipeline_mode = #tpu.pipeline_mode<synchronous>, transform_indices = @transform_6, window_bounds = array<i64: 1, 32>}, {pipeline_mode = #tpu.pipeline_mode<synchronous>, transform_indices = @transform_7, window_bounds = array<i64: 1, 32>}, {pipeline_mode = #tpu.pipeline_mode<synchronous>, transform_indices = @transform_8, window_bounds = array<i64: 1, 32>}, {transform_indices = @transform_9, window_bounds = array<i64: 1, 32, 128>}, {transform_indices = @transform_10, window_bounds = array<i64: 1, 1, 128>}, {transform_indices = @transform_11, window_bounds = array<i64: 1, 32, 32>}, {transform_indices = @transform_12, window_bounds = array<i64: 1, 1, 32>}, {pipeline_mode = #tpu.pipeline_mode<synchronous>, transform_indices = @transform_13, window_bounds = array<i64: 32, 128>}, {pipeline_mode = #tpu.pipeline_mode<synchronous>, transform_indices = @transform_14, window_bounds = array<i64: 1, 128>}, {pipeline_mode = #tpu.pipeline_mode<synchronous>, transform_indices = @transform_15, window_bounds = array<i64: 32, 128>}]} {
    %c0_i32 = arith.constant 0 : i32
    %0 = arith.cmpi eq, %arg0, %c0_i32 : i32
    %1 = arith.extui %0 : i1 to i32
    %c0_i32_0 = arith.constant 0 : i32
    %2 = arith.cmpi ne, %1, %c0_i32_0 : i32
    scf.if %2 {
      %c0_41 = arith.constant 0 : index
      %c0_42 = arith.constant 0 : index
      %65 = vector.load %arg4[%c0_41, %c0_42] : memref<32x16xbf16, #tpu.memory_space<vmem>>, vector<32x16xbf16>
      %c0_43 = arith.constant 0 : index
      %c0_44 = arith.constant 0 : index
      %66 = vector.load %arg6[%c0_43, %c0_44] : memref<16x32xbf16, #tpu.memory_space<vmem>>, vector<16x32xbf16>
      %cst_45 = arith.constant dense<0.000000e+00> : vector<32x32xf32>
      %67 = tpu.matmul %65, %66, %cst_45 {dimension_numbers = #tpu.dot_dimension_numbers<[1], [0], [0], [1], [0, 0, 1, 1], [], []>} : vector<32x16xbf16>, vector<16x32xbf16>, vector<32x32xf32> -> vector<32x32xf32>
      %c0_46 = arith.constant 0 : index
      %c0_47 = arith.constant 0 : index
      %68 = vector.load %arg7[%c0_46, %c0_47] : memref<1x32xf32, #tpu.memory_space<vmem>>, vector<1x32xf32>
      %69 = vector.broadcast %68 : vector<1x32xf32> to vector<32x32xf32>
      %70 = arith.addf %67, %69 : vector<32x32xf32>
      %c0_48 = arith.constant 0 : index
      %c0_49 = arith.constant 0 : index
      %71 = vector.load %arg17[%c0_48, %c0_49] : memref<32x32xf32, #tpu.memory_space<vmem>>, vector<32x32xf32>
      tpu.vector_store %arg17[%c0_48, %c0_49], %70 {strides = array<i32>} : memref<32x32xf32, #tpu.memory_space<vmem>>, vector<32x32xf32>,
      %c0_50 = arith.constant 0 : index
      %c0_51 = arith.constant 0 : index
      %72 = vector.load %arg5[%c0_50, %c0_51] : memref<64x1xf32, #tpu.memory_space<vmem>>, vector<64x1xf32>
      %c0_52 = arith.constant 0 : index
      %c0_53 = arith.constant 0 : index
      %73 = vector.load %arg8[%c0_52, %c0_53] : memref<1x32xf32, #tpu.memory_space<vmem>>, vector<1x32xf32>
      %74 = vector.broadcast %72 : vector<64x1xf32> to vector<64x32xf32>
      %75 = vector.broadcast %73 : vector<1x32xf32> to vector<64x32xf32>
      %76 = arith.mulf %74, %75 : vector<64x32xf32>
      %c0_54 = arith.constant 0 : index
      %c0_55 = arith.constant 0 : index
      %77 = vector.load %arg9[%c0_54, %c0_55] : memref<1x32xf32, #tpu.memory_space<vmem>>, vector<1x32xf32>
      %78 = vector.broadcast %77 : vector<1x32xf32> to vector<64x32xf32>
      %79 = arith.addf %76, %78 : vector<64x32xf32>
      %c0_56 = arith.constant 0 : index
      %c0_57 = arith.constant 0 : index
      %80 = vector.load %arg18[%c0_56, %c0_57] : memref<64x32xf32, #tpu.memory_space<vmem>>, vector<64x32xf32>
      tpu.vector_store %arg18[%c0_56, %c0_57], %79 {strides = array<i32>} : memref<64x32xf32, #tpu.memory_space<vmem>>, vector<64x32xf32>,
      %81 = tpu.iota {dimensions = array<i32: 1>} : vector<64x32xi32>
      %c0_58 = arith.constant 0 : index
      %c0_59 = arith.constant 0 : index
      %82 = vector.load %arg1[%c0_58, %c0_59] : memref<64x1xi32, #tpu.memory_space<vmem>>, vector<64x1xi32>
      %83 = vector.broadcast %82 : vector<64x1xi32> to vector<64x32xi32>
      %84 = arith.cmpi eq, %81, %83 : vector<64x32xi32>
      %85 = arith.extui %84 : vector<64x32xi1> to vector<64x32xi32>
      %86 = arith.sitofp %85 : vector<64x32xi32> to vector<64x32xf32>
      %87 = arith.truncf %86 : vector<64x32xf32> to vector<64x32xbf16>
      %c0_60 = arith.constant 0 : index
      %c0_61 = arith.constant 0 : index
      %88 = vector.load %arg19[%c0_60, %c0_61] : memref<128x32xbf16, #tpu.memory_space<vmem>>, vector<64x32xbf16>
      tpu.vector_store %arg19[%c0_60, %c0_61], %87 {strides = array<i32>} : memref<128x32xbf16, #tpu.memory_space<vmem>>, vector<64x32xbf16>,
      %c0_62 = arith.constant 0 : index
      %c0_63 = arith.constant 0 : index
      %89 = vector.load %arg2[%c0_62, %c0_63] : memref<64x1xi32, #tpu.memory_space<vmem>>, vector<64x1xi32>
      %90 = vector.broadcast %89 : vector<64x1xi32> to vector<64x32xi32>
      %91 = arith.cmpi eq, %81, %90 : vector<64x32xi32>
      %92 = arith.extui %91 : vector<64x32xi1> to vector<64x32xi32>
      %93 = arith.sitofp %92 : vector<64x32xi32> to vector<64x32xf32>
      %94 = arith.truncf %93 : vector<64x32xf32> to vector<64x32xbf16>
      %c64 = arith.constant 64 : index
      %c0_64 = arith.constant 0 : index
      %95 = vector.load %arg19[%c64, %c0_64] : memref<128x32xbf16, #tpu.memory_space<vmem>>, vector<64x32xbf16>
      tpu.vector_store %arg19[%c64, %c0_64], %94 {strides = array<i32>} : memref<128x32xbf16, #tpu.memory_space<vmem>>, vector<64x32xbf16>,
      %96 = tpu.iota {dimensions = array<i32: 0>} : vector<32x64xi32>
      %c0_65 = arith.constant 0 : index
      %c0_66 = arith.constant 0 : index
      %97 = vector.load %arg3[%c0_65, %c0_66] : memref<1x64xi32, #tpu.memory_space<vmem>>, vector<1x64xi32>
      %98 = vector.broadcast %97 : vector<1x64xi32> to vector<32x64xi32>
      %99 = arith.cmpi eq, %96, %98 : vector<32x64xi32>
      %100 = arith.extui %99 : vector<32x64xi1> to vector<32x64xi32>
      %101 = arith.sitofp %100 : vector<32x64xi32> to vector<32x64xf32>
      %102 = arith.truncf %101 : vector<32x64xf32> to vector<32x64xbf16>
      %c0_67 = arith.constant 0 : index
      %c0_68 = arith.constant 0 : index
      %103 = vector.load %arg20[%c0_67, %c0_68] : memref<32x64xbf16, #tpu.memory_space<vmem>>, vector<32x64xbf16>
      tpu.vector_store %arg20[%c0_67, %c0_68], %102 {strides = array<i32>} : memref<32x64xbf16, #tpu.memory_space<vmem>>, vector<32x64xbf16>,
    } else {
    }
    %c0 = arith.constant 0 : index
    %c0_1 = arith.constant 0 : index
    %3 = vector.load %arg17[%c0, %c0_1] : memref<32x32xf32, #tpu.memory_space<vmem>>, vector<32x32xf32>
    %4 = arith.truncf %3 : vector<32x32xf32> to vector<32x32xbf16>
    %c0_2 = arith.constant 0 : index
    %c0_3 = arith.constant 0 : index
    %c0_4 = arith.constant 0 : index
    %5 = vector.load %arg10[%c0_2, %c0_3, %c0_4] : memref<1x32x128xbf16, #tpu.memory_space<vmem>>, vector<1x32x128xbf16>
    %6 = vector.shape_cast %5 : vector<1x32x128xbf16> to vector<32x128xbf16>
    %cst = arith.constant dense<0.000000e+00> : vector<32x128xf32>
    %7 = tpu.matmul %4, %6, %cst {dimension_numbers = #tpu.dot_dimension_numbers<[1], [0], [0], [1], [0, 0, 1, 1], [], []>} : vector<32x32xbf16>, vector<32x128xbf16>, vector<32x128xf32> -> vector<32x128xf32>
    %c0_5 = arith.constant 0 : index
    %c0_6 = arith.constant 0 : index
    %c0_7 = arith.constant 0 : index
    %8 = vector.load %arg11[%c0_5, %c0_6, %c0_7] : memref<1x1x128xf32, #tpu.memory_space<vmem>>, vector<1x1x128xf32>
    %9 = vector.shape_cast %8 : vector<1x1x128xf32> to vector<1x128xf32>
    %10 = vector.broadcast %9 : vector<1x128xf32> to vector<32x128xf32>
    %11 = arith.addf %7, %10 : vector<32x128xf32>
    %c0_8 = arith.constant 0 : index
    %c0_9 = arith.constant 0 : index
    %12 = vector.load %arg19[%c0_8, %c0_9] : memref<128x32xbf16, #tpu.memory_space<vmem>>, vector<128x32xbf16>
    %13 = arith.truncf %11 : vector<32x128xf32> to vector<32x128xbf16>
    %cst_10 = arith.constant dense<0.000000e+00> : vector<128x128xf32>
    %14 = tpu.matmul %12, %13, %cst_10 {dimension_numbers = #tpu.dot_dimension_numbers<[1], [0], [0], [1], [0, 0, 1, 1], [], []>} : vector<128x32xbf16>, vector<32x128xbf16>, vector<128x128xf32> -> vector<128x128xf32>
    %15 = vector.extract_strided_slice %14 {offsets = [0, 0], sizes = [64, 128], strides = [1, 1]} : vector<128x128xf32> to vector<64x128xf32>
    %16 = vector.extract_strided_slice %14 {offsets = [64, 0], sizes = [64, 128], strides = [1, 1]} : vector<128x128xf32> to vector<64x128xf32>
    %17 = vector.extract_strided_slice %11 {offsets = [0, 0], sizes = [32, 32], strides = [1, 1]} : vector<32x128xf32> to vector<32x32xf32>
    %18 = vector.extract_strided_slice %15 {offsets = [0, 32], sizes = [64, 32], strides = [1, 1]} : vector<64x128xf32> to vector<64x32xf32>
    %19 = vector.extract_strided_slice %15 {offsets = [0, 64], sizes = [64, 32], strides = [1, 1]} : vector<64x128xf32> to vector<64x32xf32>
    %20 = vector.extract_strided_slice %16 {offsets = [0, 96], sizes = [64, 32], strides = [1, 1]} : vector<64x128xf32> to vector<64x32xf32>
    %c0_11 = arith.constant 0 : index
    %c0_12 = arith.constant 0 : index
    %21 = vector.load %arg18[%c0_11, %c0_12] : memref<64x32xf32, #tpu.memory_space<vmem>>, vector<64x32xf32>
    %22 = arith.truncf %21 : vector<64x32xf32> to vector<64x32xbf16>
    %c0_13 = arith.constant 0 : index
    %c0_14 = arith.constant 0 : index
    %c0_15 = arith.constant 0 : index
    %23 = vector.load %arg12[%c0_13, %c0_14, %c0_15] : memref<1x32x32xbf16, #tpu.memory_space<vmem>>, vector<1x32x32xbf16>
    %24 = vector.shape_cast %23 : vector<1x32x32xbf16> to vector<32x32xbf16>
    %cst_16 = arith.constant dense<0.000000e+00> : vector<64x32xf32>
    %25 = tpu.matmul %22, %24, %cst_16 {dimension_numbers = #tpu.dot_dimension_numbers<[1], [0], [0], [1], [0, 0, 1, 1], [], []>} : vector<64x32xbf16>, vector<32x32xbf16>, vector<64x32xf32> -> vector<64x32xf32>
    %c0_17 = arith.constant 0 : index
    %c0_18 = arith.constant 0 : index
    %c0_19 = arith.constant 0 : index
    %26 = vector.load %arg13[%c0_17, %c0_18, %c0_19] : memref<1x1x32xf32, #tpu.memory_space<vmem>>, vector<1x1x32xf32>
    %27 = vector.shape_cast %26 : vector<1x1x32xf32> to vector<1x32xf32>
    %28 = vector.broadcast %27 : vector<1x32xf32> to vector<64x32xf32>
    %29 = arith.addf %25, %28 : vector<64x32xf32>
    %30 = arith.addf %19, %20 : vector<64x32xf32>
    %31 = arith.addf %30, %29 : vector<64x32xf32>
    %32 = arith.negf %31 : vector<64x32xf32>
    %33 = math.exp %32 : vector<64x32xf32>
    %cst_20 = arith.constant 1.000000e+00 : f32
    %34 = vector.broadcast %cst_20 : f32 to vector<64x32xf32>
    %35 = arith.addf %34, %33 : vector<64x32xf32>
    %36 = arith.divf %34, %35 : vector<64x32xf32>
    %37 = arith.mulf %36, %18 : vector<64x32xf32>
    %38 = arith.truncf %37 : vector<64x32xf32> to vector<64x32xbf16>
    %c0_21 = arith.constant 0 : index
    %c0_22 = arith.constant 0 : index
    %39 = vector.load %arg21[%c0_21, %c0_22] : memref<64x64xbf16, #tpu.memory_space<vmem>>, vector<64x32xbf16>
    tpu.vector_store %arg21[%c0_21, %c0_22], %38 {strides = array<i32>} : memref<64x64xbf16, #tpu.memory_space<vmem>>, vector<64x32xbf16>,
    %40 = arith.truncf %36 : vector<64x32xf32> to vector<64x32xbf16>
    %c0_23 = arith.constant 0 : index
    %c32 = arith.constant 32 : index
    %41 = vector.load %arg21[%c0_23, %c32] : memref<64x64xbf16, #tpu.memory_space<vmem>>, vector<64x32xbf16>
    tpu.vector_store %arg21[%c0_23, %c32], %40 {strides = array<i32>} : memref<64x64xbf16, #tpu.memory_space<vmem>>, vector<64x32xbf16>,
    %c0_24 = arith.constant 0 : index
    %c0_25 = arith.constant 0 : index
    %42 = vector.load %arg20[%c0_24, %c0_25] : memref<32x64xbf16, #tpu.memory_space<vmem>>, vector<32x64xbf16>
    %c0_26 = arith.constant 0 : index
    %c0_27 = arith.constant 0 : index
    %43 = vector.load %arg21[%c0_26, %c0_27] : memref<64x64xbf16, #tpu.memory_space<vmem>>, vector<64x64xbf16>
    %cst_28 = arith.constant dense<0.000000e+00> : vector<32x64xf32>
    %44 = tpu.matmul %42, %43, %cst_28 {dimension_numbers = #tpu.dot_dimension_numbers<[1], [0], [0], [1], [0, 0, 1, 1], [], []>} : vector<32x64xbf16>, vector<64x64xbf16>, vector<32x64xf32> -> vector<32x64xf32>
    %45 = vector.extract_strided_slice %44 {offsets = [0, 0], sizes = [32, 32], strides = [1, 1]} : vector<32x64xf32> to vector<32x32xf32>
    %46 = vector.extract_strided_slice %44 {offsets = [0, 32], sizes = [32, 32], strides = [1, 1]} : vector<32x64xf32> to vector<32x32xf32>
    %cst_29 = arith.constant 9.99999997E-7 : f32
    %47 = vector.broadcast %cst_29 : f32 to vector<32x32xf32>
    %48 = arith.addf %46, %47 : vector<32x32xf32>
    %49 = tpu.reciprocal %48 {approx = true} : vector<32x32xf32> -> vector<32x32xf32>
    %50 = arith.mulf %45, %49 : vector<32x32xf32>
    %51 = arith.addf %17, %50 : vector<32x32xf32>
    %c0_30 = arith.constant 0 : index
    %c0_31 = arith.constant 0 : index
    %52 = vector.load %arg17[%c0_30, %c0_31] : memref<32x32xf32, #tpu.memory_space<vmem>>, vector<32x32xf32>
    %cst_32 = arith.constant 0.000000e+00 : f32
    %53 = vector.broadcast %cst_32 : f32 to vector<32x32xf32>
    %54 = arith.maximumf %51, %53 : vector<32x32xf32>
    %55 = arith.addf %52, %54 : vector<32x32xf32>
    %c0_33 = arith.constant 0 : index
    %c0_34 = arith.constant 0 : index
    %56 = vector.load %arg17[%c0_33, %c0_34] : memref<32x32xf32, #tpu.memory_space<vmem>>, vector<32x32xf32>
    tpu.vector_store %arg17[%c0_33, %c0_34], %55 {strides = array<i32>} : memref<32x32xf32, #tpu.memory_space<vmem>>, vector<32x32xf32>,
    %c0_35 = arith.constant 0 : index
    %c0_36 = arith.constant 0 : index
    %57 = vector.load %arg18[%c0_35, %c0_36] : memref<64x32xf32, #tpu.memory_space<vmem>>, vector<64x32xf32>
    %cst_37 = arith.constant 0.000000e+00 : f32
    %58 = vector.broadcast %cst_37 : f32 to vector<64x32xf32>
    %59 = arith.maximumf %31, %58 : vector<64x32xf32>
    %60 = arith.addf %57, %59 : vector<64x32xf32>
    %c0_38 = arith.constant 0 : index
    %c0_39 = arith.constant 0 : index
    %61 = vector.load %arg18[%c0_38, %c0_39] : memref<64x32xf32, #tpu.memory_space<vmem>>, vector<64x32xf32>
    tpu.vector_store %arg18[%c0_38, %c0_39], %60 {strides = array<i32>} : memref<64x32xf32, #tpu.memory_space<vmem>>, vector<64x32xf32>,
    %c1_i32 = arith.constant 1 : i32
    %62 = arith.cmpi eq, %arg0, %c1_i32 : i32
    %63 = arith.extui %62 : i1 to i32
    %c0_i32_40 = arith.constant 0 : i32
    %64 = arith.cmpi ne, %63, %c0_i32_40 : i32
    scf.if %64 {
      %c0_41 = arith.constant 0 : index
      %c0_42 = arith.constant 0 : index
      %65 = vector.load %arg17[%c0_41, %c0_42] : memref<32x32xf32, #tpu.memory_space<vmem>>, vector<32x32xf32>
      %66 = arith.truncf %65 : vector<32x32xf32> to vector<32x32xbf16>
      %c0_43 = arith.constant 0 : index
      %c0_44 = arith.constant 0 : index
      %67 = vector.load %arg14[%c0_43, %c0_44] : memref<32x128xbf16, #tpu.memory_space<vmem>>, vector<32x128xbf16>
      %cst_45 = arith.constant dense<0.000000e+00> : vector<32x128xf32>
      %68 = tpu.matmul %66, %67, %cst_45 {dimension_numbers = #tpu.dot_dimension_numbers<[1], [0], [0], [1], [0, 0, 1, 1], [], []>} : vector<32x32xbf16>, vector<32x128xbf16>, vector<32x128xf32> -> vector<32x128xf32>
      %c0_46 = arith.constant 0 : index
      %c0_47 = arith.constant 0 : index
      %69 = vector.load %arg15[%c0_46, %c0_47] : memref<1x128xf32, #tpu.memory_space<vmem>>, vector<1x128xf32>
      %70 = vector.broadcast %69 : vector<1x128xf32> to vector<32x128xf32>
      %71 = arith.addf %68, %70 : vector<32x128xf32>
      %cst_48 = arith.constant dense<0xFF800000> : vector<32xf32>
      %72 = vector.multi_reduction <maximumf>, %71, %cst_48 [1] : vector<32x128xf32> to vector<32xf32>
      %73 = vector.shape_cast %72 : vector<32xf32> to vector<32x1xf32>
      %74 = vector.broadcast %73 : vector<32x1xf32> to vector<32x128xf32>
      %75 = arith.subf %71, %74 : vector<32x128xf32>
      %76 = math.exp %75 : vector<32x128xf32>
      %cst_49 = arith.constant dense<0.000000e+00> : vector<32xf32>
      %77 = vector.multi_reduction <add>, %76, %cst_49 [1] : vector<32x128xf32> to vector<32xf32>
      %78 = vector.shape_cast %77 : vector<32xf32> to vector<32x1xf32>
      %79 = math.log %78 : vector<32x1xf32>
      %80 = vector.broadcast %79 : vector<32x1xf32> to vector<32x128xf32>
      %81 = arith.subf %75, %80 : vector<32x128xf32>
      %c0_50 = arith.constant 0 : index
      %c0_51 = arith.constant 0 : index
      %82 = vector.load %arg16[%c0_50, %c0_51] : memref<32x128xf32, #tpu.memory_space<vmem>>, vector<32x128xf32>
      tpu.vector_store %arg16[%c0_50, %c0_51], %81 {strides = array<i32>} : memref<32x128xf32, #tpu.memory_space<vmem>>, vector<32x128xf32>,
    } else {
    }
    return
  }
  func.func @transform_0(%arg0: i32) -> (i32, i32) {
    %c0_i32 = arith.constant 0 : i32
    %c0_i32_0 = arith.constant 0 : i32
    %c0_i32_1 = arith.constant 0 : i32
    return %c0_i32, %c0_i32_0 : i32, i32
  }
  func.func @transform_1(%arg0: i32) -> (i32, i32) {
    %c0_i32 = arith.constant 0 : i32
    %c0_i32_0 = arith.constant 0 : i32
    %c0_i32_1 = arith.constant 0 : i32
    return %c0_i32, %c0_i32_0 : i32, i32
  }
  func.func @transform_2(%arg0: i32) -> (i32, i32) {
    %c0_i32 = arith.constant 0 : i32
    %c0_i32_0 = arith.constant 0 : i32
    %c0_i32_1 = arith.constant 0 : i32
    return %c0_i32, %c0_i32_0 : i32, i32
  }
  func.func @transform_3(%arg0: i32) -> (i32, i32) {
    %c0_i32 = arith.constant 0 : i32
    %c0_i32_0 = arith.constant 0 : i32
    %c0_i32_1 = arith.constant 0 : i32
    return %c0_i32, %c0_i32_0 : i32, i32
  }
  func.func @transform_4(%arg0: i32) -> (i32, i32) {
    %c0_i32 = arith.constant 0 : i32
    %c0_i32_0 = arith.constant 0 : i32
    %c0_i32_1 = arith.constant 0 : i32
    return %c0_i32, %c0_i32_0 : i32, i32
  }
  func.func @transform_5(%arg0: i32) -> (i32, i32) {
    %c0_i32 = arith.constant 0 : i32
    %c0_i32_0 = arith.constant 0 : i32
    %c0_i32_1 = arith.constant 0 : i32
    return %c0_i32, %c0_i32_0 : i32, i32
  }
  func.func @transform_6(%arg0: i32) -> (i32, i32) {
    %c0_i32 = arith.constant 0 : i32
    %c0_i32_0 = arith.constant 0 : i32
    %c0_i32_1 = arith.constant 0 : i32
    return %c0_i32, %c0_i32_0 : i32, i32
  }
  func.func @transform_7(%arg0: i32) -> (i32, i32) {
    %c0_i32 = arith.constant 0 : i32
    %c0_i32_0 = arith.constant 0 : i32
    %c0_i32_1 = arith.constant 0 : i32
    return %c0_i32, %c0_i32_0 : i32, i32
  }
  func.func @transform_8(%arg0: i32) -> (i32, i32) {
    %c0_i32 = arith.constant 0 : i32
    %c0_i32_0 = arith.constant 0 : i32
    %c0_i32_1 = arith.constant 0 : i32
    return %c0_i32, %c0_i32_0 : i32, i32
  }
  func.func @transform_9(%arg0: i32) -> (i32, i32, i32) {
    %c0_i32 = arith.constant 0 : i32
    %c0_i32_0 = arith.constant 0 : i32
    %c0_i32_1 = arith.constant 0 : i32
    return %arg0, %c0_i32, %c0_i32_0 : i32, i32, i32
  }
  func.func @transform_10(%arg0: i32) -> (i32, i32, i32) {
    %c0_i32 = arith.constant 0 : i32
    %c0_i32_0 = arith.constant 0 : i32
    %c0_i32_1 = arith.constant 0 : i32
    return %arg0, %c0_i32, %c0_i32_0 : i32, i32, i32
  }
  func.func @transform_11(%arg0: i32) -> (i32, i32, i32) {
    %c0_i32 = arith.constant 0 : i32
    %c0_i32_0 = arith.constant 0 : i32
    %c0_i32_1 = arith.constant 0 : i32
    return %arg0, %c0_i32, %c0_i32_0 : i32, i32, i32
  }
  func.func @transform_12(%arg0: i32) -> (i32, i32, i32) {
    %c0_i32 = arith.constant 0 : i32
    %c0_i32_0 = arith.constant 0 : i32
    %c0_i32_1 = arith.constant 0 : i32
    return %arg0, %c0_i32, %c0_i32_0 : i32, i32, i32
  }
  func.func @transform_13(%arg0: i32) -> (i32, i32) {
    %c0_i32 = arith.constant 0 : i32
    %c0_i32_0 = arith.constant 0 : i32
    %c0_i32_1 = arith.constant 0 : i32
    return %c0_i32, %c0_i32_0 : i32, i32
  }
  func.func @transform_14(%arg0: i32) -> (i32, i32) {
    %c0_i32 = arith.constant 0 : i32
    %c0_i32_0 = arith.constant 0 : i32
    %c0_i32_1 = arith.constant 0 : i32
    return %c0_i32, %c0_i32_0 : i32, i32
  }
  func.func @transform_15(%arg0: i32) -> (i32, i32) {
    %c0_i32 = arith.constant 0 : i32
    %c0_i32_0 = arith.constant 0 : i32
    %c0_i32_1 = arith.constant 0 : i32
    return %c0_i32, %c0_i32_0 : i32, i32
  }
}

</mosaic_0001>

<llo_original>
// kernel: tpu_custom_call.1
$region0: #{tpu_custom_call.1}
  #allocation0 [shape = 'u32[]', space=smem, size = 0x4, offset = 0x4, fixed_abs, tag = 'smem constant byte address 0x4 - core index']
  #allocation1 [shape = 'u32[144,128]{1,0:T(1,128)}', space=vmem, size = 0x12000, scoped, tag = 'internal scratch']
  #allocation2 [shape = 'f32[32,32]{1,0:T(8,128)}', space=vmem, size = 0x4000, scoped, tag = 'scratch operand']
  #allocation3 [shape = 'f32[64,32]{1,0:T(8,128)}', space=vmem, size = 0x8000, scoped, tag = 'scratch operand']
  #allocation4 [shape = 'bf16[128,32]{1,0:T(8,128)(2,1)}', space=vmem, size = 0x8000, scoped, tag = 'scratch operand']
  #allocation5 [shape = 'bf16[32,64]{1,0:T(8,128)(2,1)}', space=vmem, size = 0x2000, scoped, tag = 'scratch operand']
  #allocation6 [shape = 'bf16[64,64]{1,0:T(8,128)(2,1)}', space=vmem, size = 0x4000, scoped, tag = 'scratch operand']
  %s0 = inlined_call_operand.vmem [shape: s32[64,1], index: 0, kind: input, shape index: {}]
  %s1 = inlined_call_operand.vmem [shape: s32[64,1], index: 1, kind: input, shape index: {}]
  %s2 = inlined_call_operand.vmem [shape: s32[1,64], index: 2, kind: input, shape index: {}]
  %s3 = inlined_call_operand.vmem [shape: bf16[32,16], index: 3, kind: input, shape index: {}]
  %s4 = inlined_call_operand.vmem [shape: f32[64,1], index: 4, kind: input, shape index: {}]
  %s5 = inlined_call_operand.vmem [shape: bf16[16,32], index: 5, kind: input, shape index: {}]
  %s6 = inlined_call_operand.vmem [shape: f32[1,32], index: 6, kind: input, shape index: {}]
  %s7 = inlined_call_operand.vmem [shape: f32[1,32], index: 7, kind: input, shape index: {}]
  %s8 = inlined_call_operand.vmem [shape: f32[1,32], index: 8, kind: input, shape index: {}]
  %s9 = inlined_call_operand.vmem [shape: bf16[2,32,128], index: 9, kind: input, shape index: {}]
  %s10 = inlined_call_operand.vmem [shape: f32[2,1,128], index: 10, kind: input, shape index: {}]
  %s11 = inlined_call_operand.vmem [shape: bf16[2,32,32], index: 11, kind: input, shape index: {}]
  %s12 = inlined_call_operand.vmem [shape: f32[2,1,32], index: 12, kind: input, shape index: {}]
  %s13 = inlined_call_operand.vmem [shape: bf16[32,128], index: 13, kind: input, shape index: {}]
  %s14 = inlined_call_operand.vmem [shape: f32[1,128], index: 14, kind: input, shape index: {}]
  %s15 = inlined_call_operand.hbm [shape: f32[32,128], index: 15, kind: output, shape index: {}]
  %s16 = sld [smem:[#allocation0]]
  $region101: #{tpu_custom_call.1} parent=0
    _
  %s18 = ssub.s32 1, %s16
  %s19 = scalar_select 0, %s18, %s16
  $region1: #{tpu_custom_call.1} parent=0
    #allocation7 [shape = 'u8[16384]{0}', space=vmem, size = 0x4000, scoped, tag = 'output window, operand 0, single buffered']
    #allocation8 [shape = 's32[2]{0}', space=sflag, size = 0x8, scoped, tag = 'scoped memory for tpu_custom_call.1']
    %20 = vsyncpa [#allocation8], 0
    loop: start=0, step=1, limit=4
    $region2: #{tpu_custom_call.1} parent=1 // loop_pre_header
      _
    $region3: #{tpu_custom_call.1} parent=1 // loop_header
      %s22 = sphi 0, %s26
      %p23 = scmp.ge.s32.totalorder %s22, 4
      %s30 = sphi 0, %s30
      %s32 = sphi 0, %s30
      %s33 = sphi 0, %s32
      %s47 = sphi 0, %s33
      %s51 = sphi 0, %s51
      %s53 = sphi 0, %s51
      %s54 = sphi 0, %s53
      %s68 = sphi 0, %s54
      %s72 = sphi 0, %s72
      %s74 = sphi 0, %s72
      %s75 = sphi 0, %s74
      %s89 = sphi 0, %s75
      %s93 = sphi 0, %s93
      %s95 = sphi 0, %s93
      %s96 = sphi 0, %s95
      %s110 = sphi 0, %s96
      %s114 = sphi 0, %s114
      %s116 = sphi 0, %s114
      %s117 = sphi 0, %s116
      %s131 = sphi 0, %s117
      %s135 = sphi 0, %s135
      %s137 = sphi 0, %s135
      %s138 = sphi 0, %s137
      %s152 = sphi 0, %s138
      %s156 = sphi 0, %s156
      %s158 = sphi 0, %s156
      %s159 = sphi 0, %s158
      %s173 = sphi 0, %s159
      %s177 = sphi 0, %s177
      %s179 = sphi 0, %s177
      %s180 = sphi 0, %s179
      %s194 = sphi 0, %s180
      %s198 = sphi 0, %s198
      %s200 = sphi 0, %s198
      %s201 = sphi 0, %s200
      %s215 = sphi 0, %s201
      %s221 = sphi 0, %s223
      %s224 = sphi 0, %s221
      %s225 = sphi 0, %s224
      %s241 = sphi 0, %s225
      %s247 = sphi 0, %s249
      %s250 = sphi 0, %s247
      %s251 = sphi 0, %s250
      %s267 = sphi 0, %s251
      %s273 = sphi 0, %s275
      %s276 = sphi 0, %s273
      %s277 = sphi 0, %s276
      %s293 = sphi 0, %s277
      %s299 = sphi 0, %s301
      %s302 = sphi 0, %s299
      %s303 = sphi 0, %s302
      %s319 = sphi 0, %s303
      %s323 = sphi 0, %s323
      %s325 = sphi 0, %s323
      %s326 = sphi 0, %s325
      %s340 = sphi 0, %s326
      %s344 = sphi 0, %s344
      %s346 = sphi 0, %s344
      %s347 = sphi 0, %s346
      %s361 = sphi 0, %s347
      %s365 = sphi 0, %s365
      %s367 = sphi 0, %s365
      %s368 = sphi 0, %s367
      %s382 = sphi 0, %s368
    $region4: #{tpu_custom_call.1} parent=1 // loop_header_branch
      %25 = sbr.rel (%p23) target = $region8
    $region5: #{tpu_custom_call.1} parent=1 // loop_body
      %s27 = ssub.s32 %s22, 1
      %s28 = ssub.s32 %s22, 2
      %s29 = sadd.s32 %s22, 1
      %s31 = sadd.s32 %s30, 1
      %p34 = scmp.eq.s32.totalorder %s22, 1
      %p35 = scmp.ne.s32.totalorder %s30, %s32
      %p36 = scmp.eq.s32.totalorder %s22, 0
      %p37 = por %p35, %p36
      %p38 = scmp.ne.s32.totalorder %s30, %s32
      %p39 = scmp.eq.s32.totalorder %s27, 1
      %p40 = por %p38, %p39
      %p41 = scmp.ne.s32.totalorder %s32, %s33
      %p42 = scmp.eq.s32.totalorder %s27, 0
      %p43 = por %p41, %p42
      %p44 = scmp.ne.s32.totalorder %s32, %s33
      %p45 = scmp.eq.s32.totalorder %s28, 1
      %p46 = por %p44, %p45
      %p48 = scmp.ne.s32.totalorder %s33, %s47
      %p49 = scmp.eq.s32.totalorder %s28, 0
      %p50 = por %p48, %p49
      %s52 = sadd.s32 %s51, 1
      %p55 = scmp.eq.s32.totalorder %s22, 1
      %p56 = scmp.ne.s32.totalorder %s51, %s53
      %p57 = scmp.eq.s32.totalorder %s22, 0
      %p58 = por %p56, %p57
      %p59 = scmp.ne.s32.totalorder %s51, %s53
      %p60 = scmp.eq.s32.totalorder %s27, 1
      %p61 = por %p59, %p60
      %p62 = scmp.ne.s32.totalorder %s53, %s54
      %p63 = scmp.eq.s32.totalorder %s27, 0
      %p64 = por %p62, %p63
      %p65 = scmp.ne.s32.totalorder %s53, %s54
      %p66 = scmp.eq.s32.totalorder %s28, 1
      %p67 = por %p65, %p66
      %p69 = scmp.ne.s32.totalorder %s54, %s68
      %p70 = scmp.eq.s32.totalorder %s28, 0
      %p71 = por %p69, %p70
      %s73 = sadd.s32 %s72, 1
      %p76 = scmp.eq.s32.totalorder %s22, 1
      %p77 = scmp.ne.s32.totalorder %s72, %s74
      %p78 = scmp.eq.s32.totalorder %s22, 0
      %p79 = por %p77, %p78
      %p80 = scmp.ne.s32.totalorder %s72, %s74
      %p81 = scmp.eq.s32.totalorder %s27, 1
      %p82 = por %p80, %p81
      %p83 = scmp.ne.s32.totalorder %s74, %s75
      %p84 = scmp.eq.s32.totalorder %s27, 0
      %p85 = por %p83, %p84
      %p86 = scmp.ne.s32.totalorder %s74, %s75
      %p87 = scmp.eq.s32.totalorder %s28, 1
      %p88 = por %p86, %p87
      %p90 = scmp.ne.s32.totalorder %s75, %s89
      %p91 = scmp.eq.s32.totalorder %s28, 0
      %p92 = por %p90, %p91
      %s94 = sadd.s32 %s93, 1
      %p97 = scmp.eq.s32.totalorder %s22, 1
      %p98 = scmp.ne.s32.totalorder %s93, %s95
      %p99 = scmp.eq.s32.totalorder %s22, 0
      %p100 = por %p98, %p99
      %p101 = scmp.ne.s32.totalorder %s93, %s95
      %p102 = scmp.eq.s32.totalorder %s27, 1
      %p103 = por %p101, %p102
      %p104 = scmp.ne.s32.totalorder %s95, %s96
      %p105 = scmp.eq.s32.totalorder %s27, 0
      %p106 = por %p104, %p105
      %p107 = scmp.ne.s32.totalorder %s95, %s96
      %p108 = scmp.eq.s32.totalorder %s28, 1
      %p109 = por %p107, %p108
      %p111 = scmp.ne.s32.totalorder %s96, %s110
      %p112 = scmp.eq.s32.totalorder %s28, 0
      %p113 = por %p111, %p112
      %s115 = sadd.s32 %s114, 1
      %p118 = scmp.eq.s32.totalorder %s22, 1
      %p119 = scmp.ne.s32.totalorder %s114, %s116
      %p120 = scmp.eq.s32.totalorder %s22, 0
      %p121 = por %p119, %p120
      %p122 = scmp.ne.s32.totalorder %s114, %s116
      %p123 = scmp.eq.s32.totalorder %s27, 1
      %p124 = por %p122, %p123
      %p125 = scmp.ne.s32.totalorder %s116, %s117
      %p126 = scmp.eq.s32.totalorder %s27, 0
      %p127 = por %p125, %p126
      %p128 = scmp.ne.s32.totalorder %s116, %s117
      %p129 = scmp.eq.s32.totalorder %s28, 1
      %p130 = por %p128, %p129
      %p132 = scmp.ne.s32.totalorder %s117, %s131
      %p133 = scmp.eq.s32.totalorder %s28, 0
      %p134 = por %p132, %p133
      %s136 = sadd.s32 %s135, 1
      %p139 = scmp.eq.s32.totalorder %s22, 1
      %p140 = scmp.ne.s32.totalorder %s135, %s137
      %p141 = scmp.eq.s32.totalorder %s22, 0
      %p142 = por %p140, %p141
      %p143 = scmp.ne.s32.totalorder %s135, %s137
      %p144 = scmp.eq.s32.totalorder %s27, 1
      %p145 = por %p143, %p144
      %p146 = scmp.ne.s32.totalorder %s137, %s138
      %p147 = scmp.eq.s32.totalorder %s27, 0
      %p148 = por %p146, %p147
      %p149 = scmp.ne.s32.totalorder %s137, %s138
      %p150 = scmp.eq.s32.totalorder %s28, 1
      %p151 = por %p149, %p150
      %p153 = scmp.ne.s32.totalorder %s138, %s152
      %p154 = scmp.eq.s32.totalorder %s28, 0
      %p155 = por %p153, %p154
      %s157 = sadd.s32 %s156, 1
      %p160 = scmp.eq.s32.totalorder %s22, 1
      %p161 = scmp.ne.s32.totalorder %s156, %s158
      %p162 = scmp.eq.s32.totalorder %s22, 0
      %p163 = por %p161, %p162
      %p164 = scmp.ne.s32.totalorder %s156, %s158
      %p165 = scmp.eq.s32.totalorder %s27, 1
      %p166 = por %p164, %p165
      %p167 = scmp.ne.s32.totalorder %s158, %s159
      %p168 = scmp.eq.s32.totalorder %s27, 0
      %p169 = por %p167, %p168
      %p170 = scmp.ne.s32.totalorder %s158, %s159
      %p171 = scmp.eq.s32.totalorder %s28, 1
      %p172 = por %p170, %p171
      %p174 = scmp.ne.s32.totalorder %s159, %s173
      %p175 = scmp.eq.s32.totalorder %s28, 0
      %p176 = por %p174, %p175
      %s178 = sadd.s32 %s177, 1
      %p181 = scmp.eq.s32.totalorder %s22, 1
      %p182 = scmp.ne.s32.totalorder %s177, %s179
      %p183 = scmp.eq.s32.totalorder %s22, 0
      %p184 = por %p182, %p183
      %p185 = scmp.ne.s32.totalorder %s177, %s179
      %p186 = scmp.eq.s32.totalorder %s27, 1
      %p187 = por %p185, %p186
      %p188 = scmp.ne.s32.totalorder %s179, %s180
      %p189 = scmp.eq.s32.totalorder %s27, 0
      %p190 = por %p188, %p189
      %p191 = scmp.ne.s32.totalorder %s179, %s180
      %p192 = scmp.eq.s32.totalorder %s28, 1
      %p193 = por %p191, %p192
      %p195 = scmp.ne.s32.totalorder %s180, %s194
      %p196 = scmp.eq.s32.totalorder %s28, 0
      %p197 = por %p195, %p196
      %s199 = sadd.s32 %s198, 1
      %p202 = scmp.eq.s32.totalorder %s22, 1
      %p203 = scmp.ne.s32.totalorder %s198, %s200
      %p204 = scmp.eq.s32.totalorder %s22, 0
      %p205 = por %p203, %p204
      %p206 = scmp.ne.s32.totalorder %s198, %s200
      %p207 = scmp.eq.s32.totalorder %s27, 1
      %p208 = por %p206, %p207
      %p209 = scmp.ne.s32.totalorder %s200, %s201
      %p210 = scmp.eq.s32.totalorder %s27, 0
      %p211 = por %p209, %p210
      %p212 = scmp.ne.s32.totalorder %s200, %s201
      %p213 = scmp.eq.s32.totalorder %s28, 1
      %p214 = por %p212, %p213
      %p216 = scmp.ne.s32.totalorder %s201, %s215
      %p217 = scmp.eq.s32.totalorder %s28, 0
      %p218 = por %p216, %p217
      %s219 = ssub.s32 %s22, %s29
      %p220 = scmp.eq.s32.totalorder %s219, 0
      %s222 = sadd.s32 %s221, 1
      %s223 = scalar_select %p220, %s221, %s222
      %p226 = pneg %p220
      %p227 = scmp.eq.s32.totalorder %s22, 1
      %p228 = por %p226, %p227
      %p229 = scmp.ne.s32.totalorder %s221, %s224
      %p230 = scmp.eq.s32.totalorder %s22, 0
      %p231 = por %p229, %p230
      %p232 = scmp.ne.s32.totalorder %s221, %s224
      %p233 = scmp.eq.s32.totalorder %s27, 1
      %p234 = por %p232, %p233
      %p235 = scmp.ne.s32.totalorder %s224, %s225
      %p236 = scmp.eq.s32.totalorder %s27, 0
      %p237 = por %p235, %p236
      %p238 = scmp.ne.s32.totalorder %s224, %s225
      %p239 = scmp.eq.s32.totalorder %s28, 1
      %p240 = por %p238, %p239
      %p242 = scmp.ne.s32.totalorder %s225, %s241
      %p243 = scmp.eq.s32.totalorder %s28, 0
      %p244 = por %p242, %p243
      %s245 = ssub.s32 %s22, %s29
      %p246 = scmp.eq.s32.totalorder %s245, 0
      %s248 = sadd.s32 %s247, 1
      %s249 = scalar_select %p246, %s247, %s248
      %p252 = pneg %p246
      %p253 = scmp.eq.s32.totalorder %s22, 1
      %p254 = por %p252, %p253
      %p255 = scmp.ne.s32.totalorder %s247, %s250
      %p256 = scmp.eq.s32.totalorder %s22, 0
      %p257 = por %p255, %p256
      %p258 = scmp.ne.s32.totalorder %s247, %s250
      %p259 = scmp.eq.s32.totalorder %s27, 1
      %p260 = por %p258, %p259
      %p261 = scmp.ne.s32.totalorder %s250, %s251
      %p262 = scmp.eq.s32.totalorder %s27, 0
      %p263 = por %p261, %p262
      %p264 = scmp.ne.s32.totalorder %s250, %s251
      %p265 = scmp.eq.s32.totalorder %s28, 1
      %p266 = por %p264, %p265
      %p268 = scmp.ne.s32.totalorder %s251, %s267
      %p269 = scmp.eq.s32.totalorder %s28, 0
      %p270 = por %p268, %p269
      %s271 = ssub.s32 %s22, %s29
      %p272 = scmp.eq.s32.totalorder %s271, 0
      %s274 = sadd.s32 %s273, 1
      %s275 = scalar_select %p272, %s273, %s274
      %p278 = pneg %p272
      %p279 = scmp.eq.s32.totalorder %s22, 1
      %p280 = por %p278, %p279
      %p281 = scmp.ne.s32.totalorder %s273, %s276
      %p282 = scmp.eq.s32.totalorder %s22, 0
      %p283 = por %p281, %p282
      %p284 = scmp.ne.s32.totalorder %s273, %s276
      %p285 = scmp.eq.s32.totalorder %s27, 1
      %p286 = por %p284, %p285
      %p287 = scmp.ne.s32.totalorder %s276, %s277
      %p288 = scmp.eq.s32.totalorder %s27, 0
      %p289 = por %p287, %p288
      %p290 = scmp.ne.s32.totalorder %s276, %s277
      %p291 = scmp.eq.s32.totalorder %s28, 1
      %p292 = por %p290, %p291
      %p294 = scmp.ne.s32.totalorder %s277, %s293
      %p295 = scmp.eq.s32.totalorder %s28, 0
      %p296 = por %p294, %p295
      %s297 = ssub.s32 %s22, %s29
      %p298 = scmp.eq.s32.totalorder %s297, 0
      %s300 = sadd.s32 %s299, 1
      %s301 = scalar_select %p298, %s299, %s300
      %p304 = pneg %p298
      %p305 = scmp.eq.s32.totalorder %s22, 1
      %p306 = por %p304, %p305
      %p307 = scmp.ne.s32.totalorder %s299, %s302
      %p308 = scmp.eq.s32.totalorder %s22, 0
      %p309 = por %p307, %p308
      %p310 = scmp.ne.s32.totalorder %s299, %s302
      %p311 = scmp.eq.s32.totalorder %s27, 1
      %p312 = por %p310, %p311
      %p313 = scmp.ne.s32.totalorder %s302, %s303
      %p314 = scmp.eq.s32.totalorder %s27, 0
      %p315 = por %p313, %p314
      %p316 = scmp.ne.s32.totalorder %s302, %s303
      %p317 = scmp.eq.s32.totalorder %s28, 1
      %p318 = por %p316, %p317
      %p320 = scmp.ne.s32.totalorder %s303, %s319
      %p321 = scmp.eq.s32.totalorder %s28, 0
      %p322 = por %p320, %p321
      %s324 = sadd.s32 %s323, 1
      %p327 = scmp.eq.s32.totalorder %s22, 1
      %p328 = scmp.ne.s32.totalorder %s323, %s325
      %p329 = scmp.eq.s32.totalorder %s22, 0
      %p330 = por %p328, %p329
      %p331 = scmp.ne.s32.totalorder %s323, %s325
      %p332 = scmp.eq.s32.totalorder %s27, 1
      %p333 = por %p331, %p332
      %p334 = scmp.ne.s32.totalorder %s325, %s326
      %p335 = scmp.eq.s32.totalorder %s27, 0
      %p336 = por %p334, %p335
      %p337 = scmp.ne.s32.totalorder %s325, %s326
      %p338 = scmp.eq.s32.totalorder %s28, 1
      %p339 = por %p337, %p338
      %p341 = scmp.ne.s32.totalorder %s326, %s340
      %p342 = scmp.eq.s32.totalorder %s28, 0
      %p343 = por %p341, %p342
      %s345 = sadd.s32 %s344, 1
      %p348 = scmp.eq.s32.totalorder %s22, 1
      %p349 = scmp.ne.s32.totalorder %s344, %s346
      %p350 = scmp.eq.s32.totalorder %s22, 0
      %p351 = por %p349, %p350
      %p352 = scmp.ne.s32.totalorder %s344, %s346
      %p353 = scmp.eq.s32.totalorder %s27, 1
      %p354 = por %p352, %p353
      %p355 = scmp.ne.s32.totalorder %s346, %s347
      %p356 = scmp.eq.s32.totalorder %s27, 0
      %p357 = por %p355, %p356
      %p358 = scmp.ne.s32.totalorder %s346, %s347
      %p359 = scmp.eq.s32.totalorder %s28, 1
      %p360 = por %p358, %p359
      %p362 = scmp.ne.s32.totalorder %s347, %s361
      %p363 = scmp.eq.s32.totalorder %s28, 0
      %p364 = por %p362, %p363
      %s366 = sadd.s32 %s365, 1
      %p369 = scmp.eq.s32.totalorder %s22, 1
      %p370 = scmp.ne.s32.totalorder %s365, %s367
      %p371 = scmp.eq.s32.totalorder %s22, 0
      %p372 = por %p370, %p371
      %p373 = scmp.ne.s32.totalorder %s365, %s367
      %p374 = scmp.eq.s32.totalorder %s27, 1
      %p375 = por %p373, %p374
      %p376 = scmp.ne.s32.totalorder %s367, %s368
      %p377 = scmp.eq.s32.totalorder %s27, 0
      %p378 = por %p376, %p377
      %p379 = scmp.ne.s32.totalorder %s367, %s368
      %p380 = scmp.eq.s32.totalorder %s28, 1
      %p381 = por %p379, %p380
      %p383 = scmp.ne.s32.totalorder %s368, %s382
      %p384 = scmp.eq.s32.totalorder %s28, 0
      %p385 = por %p383, %p384
      %p386 = scmp.le.s32.totalorder 1, %s22
      %p387 = scmp.lt.s32.totalorder %s22, 3
      %p388 = pnand %p386, %p387
      %p389 = pneg %p388
      // Predicated region
      $region9: #{tpu_custom_call.1} parent=5 // pred_check
        _
      $region10: #{tpu_custom_call.1} parent=5 // pred_check_branch
        %391 = sbr.rel (%p388) target = $region12
      $region11: #{tpu_custom_call.1} parent=5 // pred_region
        %s392 = ssub.s32 %s22, 1
        // Predicated region
        $region13: #{tpu_custom_call.1} parent=11 // pred_check
          %p393 = pneg %p43
        $region14: #{tpu_custom_call.1} parent=11 // pred_check_branch
          %395 = sbr.rel (%p393) target = $region16
        $region15: #{tpu_custom_call.1} parent=11 // pred_region
          _
        $region16: #{tpu_custom_call.1} parent=11 // pred_fallthru
          _
        // Predicated region
        $region17: #{tpu_custom_call.1} parent=11 // pred_check
          %p396 = pneg %p64
        $region18: #{tpu_custom_call.1} parent=11 // pred_check_branch
          %398 = sbr.rel (%p396) target = $region20
        $region19: #{tpu_custom_call.1} parent=11 // pred_region
          _
        $region20: #{tpu_custom_call.1} parent=11 // pred_fallthru
          _
        // Predicated region
        $region21: #{tpu_custom_call.1} parent=11 // pred_check
          %p399 = pneg %p85
        $region22: #{tpu_custom_call.1} parent=11 // pred_check_branch
          %401 = sbr.rel (%p399) target = $region24
        $region23: #{tpu_custom_call.1} parent=11 // pred_region
          _
        $region24: #{tpu_custom_call.1} parent=11 // pred_fallthru
          _
        // Predicated region
        $region25: #{tpu_custom_call.1} parent=11 // pred_check
          %p402 = pneg %p106
        $region26: #{tpu_custom_call.1} parent=11 // pred_check_branch
          %404 = sbr.rel (%p402) target = $region28
        $region27: #{tpu_custom_call.1} parent=11 // pred_region
          _
        $region28: #{tpu_custom_call.1} parent=11 // pred_fallthru
          _
        // Predicated region
        $region29: #{tpu_custom_call.1} parent=11 // pred_check
          %p405 = pneg %p127
        $region30: #{tpu_custom_call.1} parent=11 // pred_check_branch
          %407 = sbr.rel (%p405) target = $region32
        $region31: #{tpu_custom_call.1} parent=11 // pred_region
          _
        $region32: #{tpu_custom_call.1} parent=11 // pred_fallthru
          _
        // Predicated region
        $region33: #{tpu_custom_call.1} parent=11 // pred_check
          %p408 = pneg %p148
        $region34: #{tpu_custom_call.1} parent=11 // pred_check_branch
          %410 = sbr.rel (%p408) target = $region36
        $region35: #{tpu_custom_call.1} parent=11 // pred_region
          _
        $region36: #{tpu_custom_call.1} parent=11 // pred_fallthru
          _
        // Predicated region
        $region37: #{tpu_custom_call.1} parent=11 // pred_check
          %p411 = pneg %p169
        $region38: #{tpu_custom_call.1} parent=11 // pred_check_branch
          %413 = sbr.rel (%p411) target = $region40
        $region39: #{tpu_custom_call.1} parent=11 // pred_region
          _
        $region40: #{tpu_custom_call.1} parent=11 // pred_fallthru
          _
        // Predicated region
        $region41: #{tpu_custom_call.1} parent=11 // pred_check
          %p414 = pneg %p190
        $region42: #{tpu_custom_call.1} parent=11 // pred_check_branch
          %416 = sbr.rel (%p414) target = $region44
        $region43: #{tpu_custom_call.1} parent=11 // pred_region
          _
        $region44: #{tpu_custom_call.1} parent=11 // pred_fallthru
          _
        // Predicated region
        $region45: #{tpu_custom_call.1} parent=11 // pred_check
          %p417 = pneg %p211
        $region46: #{tpu_custom_call.1} parent=11 // pred_check_branch
          %419 = sbr.rel (%p417) target = $region48
        $region47: #{tpu_custom_call.1} parent=11 // pred_region
          _
        $region48: #{tpu_custom_call.1} parent=11 // pred_fallthru
          _
        // Predicated region
        $region49: #{tpu_custom_call.1} parent=11 // pred_check
          %p420 = pneg %p336
        $region50: #{tpu_custom_call.1} parent=11 // pred_check_branch
          %422 = sbr.rel (%p420) target = $region52
        $region51: #{tpu_custom_call.1} parent=11 // pred_region
          _
        $region52: #{tpu_custom_call.1} parent=11 // pred_fallthru
          _
        // Predicated region
        $region53: #{tpu_custom_call.1} parent=11 // pred_check
          %p423 = pneg %p357
        $region54: #{tpu_custom_call.1} parent=11 // pred_check_branch
          %425 = sbr.rel (%p423) target = $region56
        $region55: #{tpu_custom_call.1} parent=11 // pred_region
          _
        $region56: #{tpu_custom_call.1} parent=11 // pred_fallthru
          _
      $region12: #{tpu_custom_call.1} parent=5 // pred_fallthru
        _
      %p426 = scmp.lt.s32.totalorder %s22, 2
      // Predicated region
      $region57: #{tpu_custom_call.1} parent=5 // pred_check
        %p427 = pneg %p426
      $region58: #{tpu_custom_call.1} parent=5 // pred_check_branch
        %429 = sbr.rel (%p427) target = $region60
      $region59: #{tpu_custom_call.1} parent=5 // pred_region
        // Predicated region
        $region61: #{tpu_custom_call.1} parent=59 // pred_check
          %p430 = pneg %p231
        $region62: #{tpu_custom_call.1} parent=59 // pred_check_branch
          %432 = sbr.rel (%p430) target = $region64
        $region63: #{tpu_custom_call.1} parent=59 // pred_region
          %p433 = scmp.lt.s32.totalorder %s22, 1
          %s434 = scalar_select %p433, %s22, 1
          %s435 = smul.addr %s434, 4
          %s436 = smul.addr %s435, 4
          %s437 = scalar_lea.vmem %s9, %s436
        $region64: #{tpu_custom_call.1} parent=59 // pred_fallthru
          _
        // Predicated region
        $region65: #{tpu_custom_call.1} parent=59 // pred_check
          %p438 = pneg %p257
        $region66: #{tpu_custom_call.1} parent=59 // pred_check_branch
          %440 = sbr.rel (%p438) target = $region68
        $region67: #{tpu_custom_call.1} parent=59 // pred_region
          %p441 = scmp.lt.s32.totalorder %s22, 1
          %s442 = scalar_select %p441, %s22, 1
          %s443 = scalar_lea.vmem %s10, %s442
        $region68: #{tpu_custom_call.1} parent=59 // pred_fallthru
          _
        // Predicated region
        $region69: #{tpu_custom_call.1} parent=59 // pred_check
          %p444 = pneg %p283
        $region70: #{tpu_custom_call.1} parent=59 // pred_check_branch
          %446 = sbr.rel (%p444) target = $region72
        $region71: #{tpu_custom_call.1} parent=59 // pred_region
          %p447 = scmp.lt.s32.totalorder %s22, 1
          %s448 = scalar_select %p447, %s22, 1
          %s449 = smul.addr %s448, 4
          %s450 = smul.addr %s449, 4
          %s451 = scalar_lea.vmem %s11, %s450
        $region72: #{tpu_custom_call.1} parent=59 // pred_fallthru
          _
        // Predicated region
        $region73: #{tpu_custom_call.1} parent=59 // pred_check
          %p452 = pneg %p309
        $region74: #{tpu_custom_call.1} parent=59 // pred_check_branch
          %454 = sbr.rel (%p452) target = $region76
        $region75: #{tpu_custom_call.1} parent=59 // pred_region
          %p455 = scmp.lt.s32.totalorder %s22, 1
          %s456 = scalar_select %p455, %s22, 1
          %s457 = scalar_lea.vmem %s12, %s456
        $region76: #{tpu_custom_call.1} parent=59 // pred_fallthru
          _
      $region60: #{tpu_custom_call.1} parent=5 // pred_fallthru
        _
      %p458 = scmp.le.s32.totalorder 1, %s22
      %p459 = scmp.lt.s32.totalorder %s22, 3
      %p460 = pnand %p458, %p459
      %p461 = pneg %p460
      // Predicated region
      $region77: #{tpu_custom_call.1} parent=5 // pred_check
        _
      $region78: #{tpu_custom_call.1} parent=5 // pred_check_branch
        %463 = sbr.rel (%p460) target = $region80
      $region79: #{tpu_custom_call.1} parent=5 // pred_region
        %s464 = ssub.s32 %s22, 1
        %p465 = pneg %p43
        %p466 = pneg %p40
        %p467 = pneg %p64
        %p468 = pneg %p61
        %p469 = pneg %p85
        %p470 = pneg %p82
        %p471 = pneg %p106
        %p472 = pneg %p103
        %p473 = pneg %p127
        %p474 = pneg %p124
        %p475 = pneg %p148
        %p476 = pneg %p145
        %p477 = pneg %p169
        %p478 = pneg %p166
        %p479 = pneg %p190
        %p480 = pneg %p187
        %p481 = pneg %p211
        %p482 = pneg %p208
        %p483 = scmp.lt.s32.totalorder %s27, 1
        %s484 = scalar_select %p483, %s27, 1
        %s485 = smul.addr %s484, 4
        %s486 = smul.addr %s485, 4
        %s487 = scalar_lea.vmem %s9, %s486
        %p488 = pneg %p237
        %p489 = pneg %p234
        %p490 = scmp.lt.s32.totalorder %s27, 1
        %s491 = scalar_select %p490, %s27, 1
        %s492 = scalar_lea.vmem %s10, %s491
        %p493 = pneg %p263
        %p494 = pneg %p260
        %p495 = scmp.lt.s32.totalorder %s27, 1
        %s496 = scalar_select %p495, %s27, 1
        %s497 = smul.addr %s496, 4
        %s498 = smul.addr %s497, 4
        %s499 = scalar_lea.vmem %s11, %s498
        %p500 = pneg %p289
        %p501 = pneg %p286
        %p502 = scmp.lt.s32.totalorder %s27, 1
        %s503 = scalar_select %p502, %s27, 1
        %s504 = scalar_lea.vmem %s12, %s503
        %p505 = pneg %p315
        %p506 = pneg %p312
        %p507 = pneg %p336
        %p508 = pneg %p333
        %p509 = pneg %p357
        %p510 = pneg %p354
        %p511 = pneg %p378
        %p512 = pneg %p375
        %p513 = scmp.lt.s32.totalorder %s27, 1
        %s514 = scalar_select %p513, %s27, 1
        %s515 = smul.addr %s514, 4
        %s516 = smul.addr %s515, 4
        %s517 = scalar_lea.vmem %s9, %s516
        %p518 = scmp.lt.s32.totalorder %s27, 1
        %s519 = scalar_select %p518, %s27, 1
        %s520 = scalar_lea.vmem %s10, %s519
        %p521 = scmp.lt.s32.totalorder %s27, 1
        %s522 = scalar_select %p521, %s27, 1
        %s523 = smul.addr %s522, 4
        %s524 = smul.addr %s523, 4
        %s525 = scalar_lea.vmem %s11, %s524
        %p526 = scmp.lt.s32.totalorder %s27, 1
        %s527 = scalar_select %p526, %s27, 1
        %s528 = scalar_lea.vmem %s12, %s527
        %p530 = scmp.eq.s32.totalorder %s27, 0
        // Predicated region
        $region81: #{tpu_custom_call.1} parent=79 // pred_check
          %p531 = pneg %p530
        $region82: #{tpu_custom_call.1} parent=79 // pred_check_branch
          %533 = sbr.rel (%p531) target = $region84
        $region83: #{tpu_custom_call.1} parent=79 // pred_region
          %v534 = vld [vmem:[%s3] sm:$0xf]
          %v535 = vld [vmem:[%s3 + $0x4] sm:$0xf]
          %v536 = vld [vmem:[%s3 + $0x8] sm:$0xf]
          %v537 = vld [vmem:[%s3 + $0xc] sm:$0xf]
          %v538 = vld [vmem:[%s5] sm:$0xf]
          %v539 = vld [vmem:[%s5 + $0x4] sm:$0xf]
          %v540 = vld [vmem:[%s6] sm:$0x1]
          %v542 = vlaneseq
          %v543 = vshrl.u32 %v542, 7
          %v544 = vsub.s32 0, %v543
          %v545 = vrot.slane %v540, %v544
          %v551 = vunpack.c.l.b16 %v534
          %v552 = vunpack.c.l.b16 %v535
          %v553 = vunpack.c.l.b16 %v536
          %v554 = vunpack.c.l.b16 %v537
          %v555 = vpack.c.b16 %v552, %v551
          %v556 = vpack.c.b16 %v554, %v553
          %v559 = vunpack.c.l.b16 %v538
          %v560 = vunpack.c.l.b16 %v539
          %v561 = vpack.c.b16 %v560, %v559
          %vm563 = vcmask 130048
          %v565 = vsel %vm563, %v555, 0
          %v568 = vsel %vm563, %v556, 0
          %570 = vmatprep.subr.bf16.mxu0 0
          %571 = vmatpush1.bf16.msra.mxu0 0
          %572 = vmatprep.subr.bf16.mxu0 0
          %573 = vmatpush1.bf16.msra.mxu0 0
          %574 = vmatprep.subr.bf16.mxu0 0
          %575 = vmatpush1.bf16.msra.mxu0 0
          %576 = vmatprep.subr.bf16.mxu0 0
          %577 = vmatpush1.bf16.msra.mxu0 0
          %578 = vmatprep.subr.bf16.mxu0 0
          %579 = vmatpush1.bf16.msra.mxu0 0
          %580 = vmatprep.subr.bf16.mxu0 0
          %581 = vmatpush1.bf16.msra.mxu0 0
          %582 = vmatprep.subr.bf16.mxu0 0
          %583 = vmatpush1.bf16.msra.mxu0 0
          %584 = vmatprep.subr.bf16.mxu0 0
          %585 = vmatpush1.bf16.msra.mxu0 %v561
          %586 = vmatprep.subr.bf16.mxu0 0
          %587 = vmatpush2.bf16.msra.mxu0 0
          %588 = vmatprep.subr.bf16.mxu0 0
          %589 = vmatpush2.bf16.msra.mxu0 0
          %590 = vmatprep.subr.bf16.mxu0 0
          %591 = vmatpush2.bf16.msra.mxu0 0
          %592 = vmatprep.subr.bf16.mxu0 0
          %593 = vmatpush2.bf16.msra.mxu0 0
          %594 = vmatprep.subr.bf16.mxu0 0
          %595 = vmatpush2.bf16.msra.mxu0 0
          %596 = vmatprep.subr.bf16.mxu0 0
          %597 = vmatpush2.bf16.msra.mxu0 0
          %598 = vmatprep.subr.bf16.mxu0 0
          %599 = vmatpush2.bf16.msra.mxu0 0
          %600 = vmatprep.subr.bf16.mxu0 0
          %601 = vmatpush2.bf16.msra.mxu0 0
          %602 = vmatprep.mubr.bf16.mxu0 0
          %603 = vmatmul.mubr.bf16.gmra.mxu0 %v565
          %v604 = vpop.f32.mrf.mxu0
          %v605 = vadd.f32 %v545, %v604
          %v606 = vpop.f32.mrf.mxu0
          %v607 = vpop.f32.mrf.mxu0
          %v608 = vadd.f32 %v545, %v607
          %v609 = vpop.f32.mrf.mxu0
          %610 = vmatprep.mubr.bf16.mxu0 0
          %611 = vmatmul.mubr.bf16.gmra.mxu0 %v568
          %v612 = vpop.f32.mrf.mxu0
          %v613 = vadd.f32 %v545, %v612
          %v614 = vpop.f32.mrf.mxu0
          %v615 = vpop.f32.mrf.mxu0
          %v616 = vadd.f32 %v545, %v615
          %v617 = vpop.f32.mrf.mxu0
          %618 = vdwg.mxu0
          %vm619 = vcmask 261120
          %620 = vst.msk [vmem:[#allocation2] sm:$0xff] %vm619, %v605
          %621 = vst.msk [vmem:[#allocation2 + $0x8] sm:$0xff] %vm619, %v608
          %622 = vst.msk [vmem:[#allocation2 + $0x10] sm:$0xff] %vm619, %v613
          %623 = vst.msk [vmem:[#allocation2 + $0x18] sm:$0xff] %vm619, %v616
          %v624 = vld [vmem:[%s4] sm:$0xff]
          %v625 = vld [vmem:[%s4 + $0x8] sm:$0xff]
          %v626 = vld [vmem:[%s4 + $0x10] sm:$0xff]
          %v627 = vld [vmem:[%s4 + $0x18] sm:$0xff]
          %v628 = vld [vmem:[%s4 + $0x20] sm:$0xff]
          %v629 = vld [vmem:[%s4 + $0x28] sm:$0xff]
          %v630 = vld [vmem:[%s4 + $0x30] sm:$0xff]
          %v631 = vld [vmem:[%s4 + $0x38] sm:$0xff]
          %v632 = vld [vmem:[%s7] sm:$0x1]
          %634 = vset.pattern.permute.xlu0 0
          %635 = vperm.xlu0 %634, %v624
          %v636 = vpop.permute.xlu0 %635
          %639 = vset.pattern.permute.xlu0 0
          %640 = vperm.xlu0 %639, %v625
          %v641 = vpop.permute.xlu0 %640
          %644 = vset.pattern.permute.xlu0 0
          %645 = vperm.xlu0 %644, %v626
          %v646 = vpop.permute.xlu0 %645
          %649 = vset.pattern.permute.xlu0 0
          %650 = vperm.xlu0 %649, %v627
          %v651 = vpop.permute.xlu0 %650
          %654 = vset.pattern.permute.xlu0 0
          %655 = vperm.xlu0 %654, %v628
          %v656 = vpop.permute.xlu0 %655
          %659 = vset.pattern.permute.xlu0 0
          %660 = vperm.xlu0 %659, %v629
          %v661 = vpop.permute.xlu0 %660
          %664 = vset.pattern.permute.xlu0 0
          %665 = vperm.xlu0 %664, %v630
          %v666 = vpop.permute.xlu0 %665
          %669 = vset.pattern.permute.xlu0 0
          %670 = vperm.xlu0 %669, %v631
          %v671 = vpop.permute.xlu0 %670
          %v674 = vlaneseq
          %v675 = vshrl.u32 %v674, 7
          %v676 = vsub.s32 0, %v675
          %v677 = vrot.slane %v632, %v676
          %v679 = vmul.f32 %v636, %v677
          %v680 = vmul.f32 %v641, %v677
          %v681 = vmul.f32 %v646, %v677
          %v682 = vmul.f32 %v651, %v677
          %v683 = vmul.f32 %v656, %v677
          %v684 = vmul.f32 %v661, %v677
          %v685 = vmul.f32 %v666, %v677
          %v686 = vmul.f32 %v671, %v677
          %v687 = vld [vmem:[%s8] sm:$0x1]
          %v689 = vlaneseq
          %v690 = vshrl.u32 %v689, 7
          %v691 = vsub.s32 0, %v690
          %v692 = vrot.slane %v687, %v691
          %v694 = vadd.f32 %v679, %v692
          %v695 = vadd.f32 %v680, %v692
          %v696 = vadd.f32 %v681, %v692
          %v697 = vadd.f32 %v682, %v692
          %v698 = vadd.f32 %v683, %v692
          %v699 = vadd.f32 %v684, %v692
          %v700 = vadd.f32 %v685, %v692
          %v701 = vadd.f32 %v686, %v692
          %702 = vst.msk [vmem:[#allocation3] sm:$0xff] %vm619, %v694
          %703 = vst.msk [vmem:[#allocation3 + $0x8] sm:$0xff] %vm619, %v695
          %704 = vst.msk [vmem:[#allocation3 + $0x10] sm:$0xff] %vm619, %v696
          %705 = vst.msk [vmem:[#allocation3 + $0x18] sm:$0xff] %vm619, %v697
          %706 = vst.msk [vmem:[#allocation3 + $0x20] sm:$0xff] %vm619, %v698
          %707 = vst.msk [vmem:[#allocation3 + $0x28] sm:$0xff] %vm619, %v699
          %708 = vst.msk [vmem:[#allocation3 + $0x30] sm:$0xff] %vm619, %v700
          %709 = vst.msk [vmem:[#allocation3 + $0x38] sm:$0xff] %vm619, %v701
          %v710 = vlaneseq
          %v711 = vand.u32 %v710, 127
          %v712 = vld [vmem:[%s0] sm:$0xff]
          %v713 = vld [vmem:[%s0 + $0x8] sm:$0xff]
          %v714 = vld [vmem:[%s0 + $0x10] sm:$0xff]
          %v715 = vld [vmem:[%s0 + $0x18] sm:$0xff]
          %v716 = vld [vmem:[%s0 + $0x20] sm:$0xff]
          %v717 = vld [vmem:[%s0 + $0x28] sm:$0xff]
          %v718 = vld [vmem:[%s0 + $0x30] sm:$0xff]
          %v719 = vld [vmem:[%s0 + $0x38] sm:$0xff]
          %720 = vset.pattern.permute.xlu0 0
          %721 = vperm.xlu0 %720, %v712
          %v722 = vpop.permute.xlu0 %721
          %723 = vset.pattern.permute.xlu0 0
          %724 = vperm.xlu0 %723, %v713
          %v725 = vpop.permute.xlu0 %724
          %726 = vset.pattern.permute.xlu0 0
          %727 = vperm.xlu0 %726, %v714
          %v728 = vpop.permute.xlu0 %727
          %729 = vset.pattern.permute.xlu0 0
          %730 = vperm.xlu0 %729, %v715
          %v731 = vpop.permute.xlu0 %730
          %732 = vset.pattern.permute.xlu0 0
          %733 = vperm.xlu0 %732, %v716
          %v734 = vpop.permute.xlu0 %733
          %735 = vset.pattern.permute.xlu0 0
          %736 = vperm.xlu0 %735, %v717
          %v737 = vpop.permute.xlu0 %736
          %738 = vset.pattern.permute.xlu0 0
          %739 = vperm.xlu0 %738, %v718
          %v740 = vpop.permute.xlu0 %739
          %741 = vset.pattern.permute.xlu0 0
          %742 = vperm.xlu0 %741, %v719
          %v743 = vpop.permute.xlu0 %742
          %vm744 = vcmp.eq.s32.totalorder %v711, %v722
          %vm745 = vcmp.eq.s32.totalorder %v711, %v725
          %vm746 = vcmp.eq.s32.totalorder %v711, %v728
          %vm747 = vcmp.eq.s32.totalorder %v711, %v731
          %vm748 = vcmp.eq.s32.totalorder %v711, %v734
          %vm749 = vcmp.eq.s32.totalorder %v711, %v737
          %vm750 = vcmp.eq.s32.totalorder %v711, %v740
          %vm751 = vcmp.eq.s32.totalorder %v711, %v743
          %v752 = vsel %vm744, 1, 0
          %v753 = vsel %vm745, 1, 0
          %v754 = vsel %vm746, 1, 0
          %v755 = vsel %vm747, 1, 0
          %v756 = vsel %vm748, 1, 0
          %v757 = vsel %vm749, 1, 0
          %v758 = vsel %vm750, 1, 0
          %v759 = vsel %vm751, 1, 0
          %v760 = vcvt.s32.f32 %v752
          %v761 = vcvt.s32.f32 %v753
          %v762 = vcvt.s32.f32 %v754
          %v763 = vcvt.s32.f32 %v755
          %v764 = vcvt.s32.f32 %v756
          %v765 = vcvt.s32.f32 %v757
          %v766 = vcvt.s32.f32 %v758
          %v767 = vcvt.s32.f32 %v759
          %v768 = vpack.c.bf16 %v761, %v760
          %v769 = vpack.c.bf16 %v763, %v762
          %v770 = vpack.c.bf16 %v765, %v764
          %v771 = vpack.c.bf16 %v767, %v766
          %v776 = vunpack.c.l.b16 %v768
          %v777 = vunpack.c.h.b16 %v768
          %v778 = vunpack.c.l.b16 %v769
          %v779 = vunpack.c.h.b16 %v769
          %v780 = vunpack.c.l.b16 %v770
          %v781 = vunpack.c.h.b16 %v770
          %v782 = vunpack.c.l.b16 %v771
          %v783 = vunpack.c.h.b16 %v771
          %v784 = vpack.c.b16 %v776, %v776
          %v785 = vpack.c.b16 %v777, %v777
          %v786 = vpack.c.b16 %v778, %v778
          %v787 = vpack.c.b16 %v779, %v779
          %v788 = vpack.c.b16 %v780, %v780
          %v789 = vpack.c.b16 %v781, %v781
          %v790 = vpack.c.b16 %v782, %v782
          %v791 = vpack.c.b16 %v783, %v783
          %vm800 = vcmask 257024
          %801 = vst.msk [vmem:[#allocation4] sm:$0xf] %vm800, %v784
          %802 = vst.msk [vmem:[#allocation4 + $0x4] sm:$0xf] %vm800, %v785
          %803 = vst.msk [vmem:[#allocation4 + $0x8] sm:$0xf] %vm800, %v786
          %804 = vst.msk [vmem:[#allocation4 + $0xc] sm:$0xf] %vm800, %v787
          %805 = vst.msk [vmem:[#allocation4 + $0x10] sm:$0xf] %vm800, %v788
          %806 = vst.msk [vmem:[#allocation4 + $0x14] sm:$0xf] %vm800, %v789
          %807 = vst.msk [vmem:[#allocation4 + $0x18] sm:$0xf] %vm800, %v790
          %808 = vst.msk [vmem:[#allocation4 + $0x1c] sm:$0xf] %vm800, %v791
          %v809 = vld [vmem:[%s1] sm:$0xff]
          %v810 = vld [vmem:[%s1 + $0x8] sm:$0xff]
          %v811 = vld [vmem:[%s1 + $0x10] sm:$0xff]
          %v812 = vld [vmem:[%s1 + $0x18] sm:$0xff]
          %v813 = vld [vmem:[%s1 + $0x20] sm:$0xff]
          %v814 = vld [vmem:[%s1 + $0x28] sm:$0xff]
          %v815 = vld [vmem:[%s1 + $0x30] sm:$0xff]
          %v816 = vld [vmem:[%s1 + $0x38] sm:$0xff]
          %817 = vset.pattern.permute.xlu0 0
          %818 = vperm.xlu0 %817, %v809
          %v819 = vpop.permute.xlu0 %818
          %820 = vset.pattern.permute.xlu0 0
          %821 = vperm.xlu0 %820, %v810
          %v822 = vpop.permute.xlu0 %821
          %823 = vset.pattern.permute.xlu0 0
          %824 = vperm.xlu0 %823, %v811
          %v825 = vpop.permute.xlu0 %824
          %826 = vset.pattern.permute.xlu0 0
          %827 = vperm.xlu0 %826, %v812
          %v828 = vpop.permute.xlu0 %827
          %829 = vset.pattern.permute.xlu0 0
          %830 = vperm.xlu0 %829, %v813
          %v831 = vpop.permute.xlu0 %830
          %832 = vset.pattern.permute.xlu0 0
          %833 = vperm.xlu0 %832, %v814
          %v834 = vpop.permute.xlu0 %833
          %835 = vset.pattern.permute.xlu0 0
          %836 = vperm.xlu0 %835, %v815
          %v837 = vpop.permute.xlu0 %836
          %838 = vset.pattern.permute.xlu0 0
          %839 = vperm.xlu0 %838, %v816
          %v840 = vpop.permute.xlu0 %839
          %vm841 = vcmp.eq.s32.totalorder %v711, %v819
          %vm842 = vcmp.eq.s32.totalorder %v711, %v822
          %vm843 = vcmp.eq.s32.totalorder %v711, %v825
          %vm844 = vcmp.eq.s32.totalorder %v711, %v828
          %vm845 = vcmp.eq.s32.totalorder %v711, %v831
          %vm846 = vcmp.eq.s32.totalorder %v711, %v834
          %vm847 = vcmp.eq.s32.totalorder %v711, %v837
          %vm848 = vcmp.eq.s32.totalorder %v711, %v840
          %v849 = vsel %vm841, 1, 0
          %v850 = vsel %vm842, 1, 0
          %v851 = vsel %vm843, 1, 0
          %v852 = vsel %vm844, 1, 0
          %v853 = vsel %vm845, 1, 0
          %v854 = vsel %vm846, 1, 0
          %v855 = vsel %vm847, 1, 0
          %v856 = vsel %vm848, 1, 0
          %v857 = vcvt.s32.f32 %v849
          %v858 = vcvt.s32.f32 %v850
          %v859 = vcvt.s32.f32 %v851
          %v860 = vcvt.s32.f32 %v852
          %v861 = vcvt.s32.f32 %v853
          %v862 = vcvt.s32.f32 %v854
          %v863 = vcvt.s32.f32 %v855
          %v864 = vcvt.s32.f32 %v856
          %v865 = vpack.c.bf16 %v858, %v857
          %v866 = vpack.c.bf16 %v860, %v859
          %v867 = vpack.c.bf16 %v862, %v861
          %v868 = vpack.c.bf16 %v864, %v863
          %v873 = vunpack.c.l.b16 %v865
          %v874 = vunpack.c.h.b16 %v865
          %v875 = vunpack.c.l.b16 %v866
          %v876 = vunpack.c.h.b16 %v866
          %v877 = vunpack.c.l.b16 %v867
          %v878 = vunpack.c.h.b16 %v867
          %v879 = vunpack.c.l.b16 %v868
          %v880 = vunpack.c.h.b16 %v868
          %v881 = vpack.c.b16 %v873, %v873
          %v882 = vpack.c.b16 %v874, %v874
          %v883 = vpack.c.b16 %v875, %v875
          %v884 = vpack.c.b16 %v876, %v876
          %v885 = vpack.c.b16 %v877, %v877
          %v886 = vpack.c.b16 %v878, %v878
          %v887 = vpack.c.b16 %v879, %v879
          %v888 = vpack.c.b16 %v880, %v880
          %897 = vst.msk [vmem:[#allocation4 + $0x20] sm:$0xf] %vm800, %v881
          %898 = vst.msk [vmem:[#allocation4 + $0x24] sm:$0xf] %vm800, %v882
          %899 = vst.msk [vmem:[#allocation4 + $0x28] sm:$0xf] %vm800, %v883
          %900 = vst.msk [vmem:[#allocation4 + $0x2c] sm:$0xf] %vm800, %v884
          %901 = vst.msk [vmem:[#allocation4 + $0x30] sm:$0xf] %vm800, %v885
          %902 = vst.msk [vmem:[#allocation4 + $0x34] sm:$0xf] %vm800, %v886
          %903 = vst.msk [vmem:[#allocation4 + $0x38] sm:$0xf] %vm800, %v887
          %904 = vst.msk [vmem:[#allocation4 + $0x3c] sm:$0xf] %vm800, %v888
          %v905 = vlaneseq
          %v906 = vshrl.u32 %v905, 7
          %v907 = vadd.s32 %v906, 8
          %v908 = vadd.s32 %v906, 16
          %v909 = vadd.s32 %v906, 24
          %v910 = vld [vmem:[%s2] sm:$0x1]
          %v911 = vlaneseq
          %v912 = vshrl.u32 %v911, 7
          %v913 = vsub.s32 0, %v912
          %v914 = vrot.slane %v910, %v913
          %vm915 = vcmp.eq.s32.totalorder %v906, %v914
          %vm916 = vcmp.eq.s32.totalorder %v907, %v914
          %vm917 = vcmp.eq.s32.totalorder %v908, %v914
          %vm918 = vcmp.eq.s32.totalorder %v909, %v914
          %v919 = vsel %vm915, 1, 0
          %v920 = vsel %vm916, 1, 0
          %v921 = vsel %vm917, 1, 0
          %v922 = vsel %vm918, 1, 0
          %v923 = vcvt.s32.f32 %v919
          %v924 = vcvt.s32.f32 %v920
          %v925 = vcvt.s32.f32 %v921
          %v926 = vcvt.s32.f32 %v922
          %v927 = vpack.c.bf16 %v924, %v923
          %v928 = vpack.c.bf16 %v926, %v925
          %v931 = vunpack.c.l.b16 %v927
          %v932 = vunpack.c.h.b16 %v927
          %v933 = vunpack.c.l.b16 %v928
          %v934 = vunpack.c.h.b16 %v928
          %v935 = vpack.c.b16 %v931, %v931
          %v936 = vpack.c.b16 %v932, %v932
          %v937 = vpack.c.b16 %v933, %v933
          %v938 = vpack.c.b16 %v934, %v934
          %vm943 = vcmask 519168
          %944 = vst.msk [vmem:[#allocation5] sm:$0xf] %vm943, %v935
          %945 = vst.msk [vmem:[#allocation5 + $0x4] sm:$0xf] %vm943, %v936
          %946 = vst.msk [vmem:[#allocation5 + $0x8] sm:$0xf] %vm943, %v937
          %947 = vst.msk [vmem:[#allocation5 + $0xc] sm:$0xf] %vm943, %v938
        $region84: #{tpu_custom_call.1} parent=79 // pred_fallthru
          _
        %v948 = vld [vmem:[#allocation2] sm:$0xff]
        %v949 = vld [vmem:[#allocation2 + $0x8] sm:$0xff]
        %v950 = vld [vmem:[#allocation2 + $0x10] sm:$0xff]
        %v951 = vld [vmem:[#allocation2 + $0x18] sm:$0xff]
        %v952 = vpack.c.bf16 %v949, %v948
        %v953 = vpack.c.bf16 %v951, %v950
        %v954 = vld [vmem:[%s517] sm:$0xf]
        %v955 = vld [vmem:[%s517 + $0x4] sm:$0xf]
        %v956 = vld [vmem:[%s517 + $0x8] sm:$0xf]
        %v957 = vld [vmem:[%s517 + $0xc] sm:$0xf]
        %v958 = vld [vmem:[%s520] sm:$0x1]
        %v960 = vlaneseq
        %v961 = vshrl.u32 %v960, 7
        %v962 = vsub.s32 0, %v961
        %v963 = vrot.slane %v958, %v962
        %v969 = vunpack.c.l.b16 %v954
        %v970 = vunpack.c.l.b16 %v955
        %v971 = vunpack.c.l.b16 %v956
        %v972 = vunpack.c.l.b16 %v957
        %v973 = vpack.c.b16 %v970, %v969
        %v974 = vpack.c.b16 %v972, %v971
        %vm977 = vcmask 261120
        %v979 = vsel %vm977, %v952, 0
        %v982 = vsel %vm977, %v953, 0
        %984 = vmatprep.subr.bf16.mxu0 0
        %985 = vmatpush1.bf16.msra.mxu0 0
        %986 = vmatprep.subr.bf16.mxu0 0
        %987 = vmatpush1.bf16.msra.mxu0 0
        %988 = vmatprep.subr.bf16.mxu0 0
        %989 = vmatpush1.bf16.msra.mxu0 0
        %990 = vmatprep.subr.bf16.mxu0 0
        %991 = vmatpush1.bf16.msra.mxu0 0
        %992 = vmatprep.subr.bf16.mxu0 0
        %993 = vmatpush1.bf16.msra.mxu0 0
        %994 = vmatprep.subr.bf16.mxu0 0
        %995 = vmatpush1.bf16.msra.mxu0 0
        %996 = vmatprep.subr.bf16.mxu0 0
        %997 = vmatpush1.bf16.msra.mxu0 %v974
        %998 = vmatprep.subr.bf16.mxu0 0
        %999 = vmatpush1.bf16.msra.mxu0 %v973
        %1000 = vmatprep.subr.bf16.mxu0 0
        %1001 = vmatpush2.bf16.msra.mxu0 0
        %1002 = vmatprep.subr.bf16.mxu0 0
        %1003 = vmatpush2.bf16.msra.mxu0 0
        %1004 = vmatprep.subr.bf16.mxu0 0
        %1005 = vmatpush2.bf16.msra.mxu0 0
        %1006 = vmatprep.subr.bf16.mxu0 0
        %1007 = vmatpush2.bf16.msra.mxu0 0
        %1008 = vmatprep.subr.bf16.mxu0 0
        %1009 = vmatpush2.bf16.msra.mxu0 0
        %1010 = vmatprep.subr.bf16.mxu0 0
        %1011 = vmatpush2.bf16.msra.mxu0 0
        %1012 = vmatprep.subr.bf16.mxu0 0
        %1013 = vmatpush2.bf16.msra.mxu0 0
        %1014 = vmatprep.subr.bf16.mxu0 0
        %1015 = vmatpush2.bf16.msra.mxu0 0
        %1016 = vmatprep.mubr.bf16.mxu0 0
        %1017 = vmatmul.mubr.bf16.gmra.mxu0 %v979
        %v1018 = vpop.f32.mrf.mxu0
        %v1019 = vadd.f32 %v963, %v1018
        %v1020 = vpop.f32.mrf.mxu0
        %v1021 = vpop.f32.mrf.mxu0
        %v1022 = vadd.f32 %v963, %v1021
        %v1023 = vpop.f32.mrf.mxu0
        %1024 = vmatprep.mubr.bf16.mxu0 0
        %1025 = vmatmul.mubr.bf16.gmra.mxu0 %v982
        %v1026 = vpop.f32.mrf.mxu0
        %v1027 = vadd.f32 %v963, %v1026
        %v1028 = vpop.f32.mrf.mxu0
        %v1029 = vpop.f32.mrf.mxu0
        %v1030 = vadd.f32 %v963, %v1029
        %v1031 = vpop.f32.mrf.mxu0
        %1032 = vdwg.mxu0
        %v1033 = vld [vmem:[#allocation4] sm:$0xf]
        %v1034 = vld [vmem:[#allocation4 + $0x4] sm:$0xf]
        %v1035 = vld [vmem:[#allocation4 + $0x8] sm:$0xf]
        %v1036 = vld [vmem:[#allocation4 + $0xc] sm:$0xf]
        %v1037 = vld [vmem:[#allocation4 + $0x10] sm:$0xf]
        %v1038 = vld [vmem:[#allocation4 + $0x14] sm:$0xf]
        %v1039 = vld [vmem:[#allocation4 + $0x18] sm:$0xf]
        %v1040 = vld [vmem:[#allocation4 + $0x1c] sm:$0xf]
        %v1041 = vld [vmem:[#allocation4 + $0x20] sm:$0xf]
        %v1042 = vld [vmem:[#allocation4 + $0x24] sm:$0xf]
        %v1043 = vld [vmem:[#allocation4 + $0x28] sm:$0xf]
        %v1044 = vld [vmem:[#allocation4 + $0x2c] sm:$0xf]
        %v1045 = vld [vmem:[#allocation4 + $0x30] sm:$0xf]
        %v1046 = vld [vmem:[#allocation4 + $0x34] sm:$0xf]
        %v1047 = vld [vmem:[#allocation4 + $0x38] sm:$0xf]
        %v1048 = vld [vmem:[#allocation4 + $0x3c] sm:$0xf]
        %v1049 = vpack.c.bf16 %v1022, %v1019
        %v1050 = vpack.c.bf16 %v1030, %v1027
        %v1067 = vunpack.c.l.b16 %v1033
        %v1068 = vunpack.c.l.b16 %v1034
        %v1069 = vunpack.c.l.b16 %v1035
        %v1070 = vunpack.c.l.b16 %v1036
        %v1071 = vunpack.c.l.b16 %v1037
        %v1072 = vunpack.c.l.b16 %v1038
        %v1073 = vunpack.c.l.b16 %v1039
        %v1074 = vunpack.c.l.b16 %v1040
        %v1075 = vunpack.c.l.b16 %v1041
        %v1076 = vunpack.c.l.b16 %v1042
        %v1077 = vunpack.c.l.b16 %v1043
        %v1078 = vunpack.c.l.b16 %v1044
        %v1079 = vunpack.c.l.b16 %v1045
        %v1080 = vunpack.c.l.b16 %v1046
        %v1081 = vunpack.c.l.b16 %v1047
        %v1082 = vunpack.c.l.b16 %v1048
        %v1083 = vpack.c.b16 %v1068, %v1067
        %v1084 = vpack.c.b16 %v1070, %v1069
        %v1085 = vpack.c.b16 %v1072, %v1071
        %v1086 = vpack.c.b16 %v1074, %v1073
        %v1087 = vpack.c.b16 %v1076, %v1075
        %v1088 = vpack.c.b16 %v1078, %v1077
        %v1089 = vpack.c.b16 %v1080, %v1079
        %v1090 = vpack.c.b16 %v1082, %v1081
        %v1092 = vsel %vm977, %v1083, 0
        %v1095 = vsel %vm977, %v1084, 0
        %v1098 = vsel %vm977, %v1085, 0
        %v1101 = vsel %vm977, %v1086, 0
        %v1104 = vsel %vm977, %v1087, 0
        %v1107 = vsel %vm977, %v1088, 0
        %v1110 = vsel %vm977, %v1089, 0
        %v1113 = vsel %vm977, %v1090, 0
        %1115 = vmatprep.subr.bf16.mxu0 0
        %1116 = vmatpush1.bf16.msra.mxu0 0
        %1117 = vmatprep.subr.bf16.mxu0 0
        %1118 = vmatpush1.bf16.msra.mxu0 0
        %1119 = vmatprep.subr.bf16.mxu0 0
        %1120 = vmatpush1.bf16.msra.mxu0 0
        %1121 = vmatprep.subr.bf16.mxu0 0
        %1122 = vmatpush1.bf16.msra.mxu0 0
        %1123 = vmatprep.subr.bf16.mxu0 0
        %1124 = vmatpush1.bf16.msra.mxu0 0
        %1125 = vmatprep.subr.bf16.mxu0 0
        %1126 = vmatpush1.bf16.msra.mxu0 0
        %1127 = vmatprep.subr.bf16.mxu0 0
        %1128 = vmatpush1.bf16.msra.mxu0 %v1050
        %1129 = vmatprep.subr.bf16.mxu0 0
        %1130 = vmatpush1.bf16.msra.mxu0 %v1049
        %1131 = vmatprep.subr.bf16.mxu0 0
        %1132 = vmatpush2.bf16.msra.mxu0 0
        %1133 = vmatprep.subr.bf16.mxu0 0
        %1134 = vmatpush2.bf16.msra.mxu0 0
        %1135 = vmatprep.subr.bf16.mxu0 0
        %1136 = vmatpush2.bf16.msra.mxu0 0
        %1137 = vmatprep.subr.bf16.mxu0 0
        %1138 = vmatpush2.bf16.msra.mxu0 0
        %1139 = vmatprep.subr.bf16.mxu0 0
        %1140 = vmatpush2.bf16.msra.mxu0 0
        %1141 = vmatprep.subr.bf16.mxu0 0
        %1142 = vmatpush2.bf16.msra.mxu0 0
        %1143 = vmatprep.subr.bf16.mxu0 0
        %1144 = vmatpush2.bf16.msra.mxu0 0
        %1145 = vmatprep.subr.bf16.mxu0 0
        %1146 = vmatpush2.bf16.msra.mxu0 0
        %1147 = vmatprep.mubr.bf16.mxu0 0
        %1148 = vmatmul.mubr.bf16.gmra.mxu0 %v1092
        %v1149 = vpop.f32.mrf.mxu0
        %v1150 = vadd.f32 0.0, %v1149
        %v1151 = vpop.f32.mrf.mxu0
        %v1152 = vpop.f32.mrf.mxu0
        %v1153 = vadd.f32 0.0, %v1152
        %v1154 = vpop.f32.mrf.mxu0
        %1155 = vmatprep.mubr.bf16.mxu0 0
        %1156 = vmatmul.mubr.bf16.gmra.mxu0 %v1095
        %v1157 = vpop.f32.mrf.mxu0
        %v1158 = vadd.f32 0.0, %v1157
        %v1159 = vpop.f32.mrf.mxu0
        %v1160 = vpop.f32.mrf.mxu0
        %v1161 = vadd.f32 0.0, %v1160
        %v1162 = vpop.f32.mrf.mxu0
        %1163 = vmatprep.mubr.bf16.mxu0 0
        %1164 = vmatmul.mubr.bf16.gmra.mxu0 %v1098
        %v1165 = vpop.f32.mrf.mxu0
        %v1166 = vadd.f32 0.0, %v1165
        %v1167 = vpop.f32.mrf.mxu0
        %v1168 = vpop.f32.mrf.mxu0
        %v1169 = vadd.f32 0.0, %v1168
        %v1170 = vpop.f32.mrf.mxu0
        %1171 = vmatprep.mubr.bf16.mxu0 0
        %1172 = vmatmul.mubr.bf16.gmra.mxu0 %v1101
        %v1173 = vpop.f32.mrf.mxu0
        %v1174 = vadd.f32 0.0, %v1173
        %v1175 = vpop.f32.mrf.mxu0
        %v1176 = vpop.f32.mrf.mxu0
        %v1177 = vadd.f32 0.0, %v1176
        %v1178 = vpop.f32.mrf.mxu0
        %1179 = vmatprep.mubr.bf16.mxu0 0
        %1180 = vmatmul.mubr.bf16.gmra.mxu0 %v1104
        %v1181 = vpop.f32.mrf.mxu0
        %v1182 = vadd.f32 0.0, %v1181
        %v1183 = vpop.f32.mrf.mxu0
        %v1184 = vpop.f32.mrf.mxu0
        %v1185 = vadd.f32 0.0, %v1184
        %v1186 = vpop.f32.mrf.mxu0
        %1187 = vmatprep.mubr.bf16.mxu0 0
        %1188 = vmatmul.mubr.bf16.gmra.mxu0 %v1107
        %v1189 = vpop.f32.mrf.mxu0
        %v1190 = vadd.f32 0.0, %v1189
        %v1191 = vpop.f32.mrf.mxu0
        %v1192 = vpop.f32.mrf.mxu0
        %v1193 = vadd.f32 0.0, %v1192
        %v1194 = vpop.f32.mrf.mxu0
        %1195 = vmatprep.mubr.bf16.mxu0 0
        %1196 = vmatmul.mubr.bf16.gmra.mxu0 %v1110
        %v1197 = vpop.f32.mrf.mxu0
        %v1198 = vadd.f32 0.0, %v1197
        %v1199 = vpop.f32.mrf.mxu0
        %v1200 = vpop.f32.mrf.mxu0
        %v1201 = vadd.f32 0.0, %v1200
        %v1202 = vpop.f32.mrf.mxu0
        %1203 = vmatprep.mubr.bf16.mxu0 0
        %1204 = vmatmul.mubr.bf16.gmra.mxu0 %v1113
        %v1205 = vpop.f32.mrf.mxu0
        %v1206 = vadd.f32 0.0, %v1205
        %v1207 = vpop.f32.mrf.mxu0
        %v1208 = vpop.f32.mrf.mxu0
        %v1209 = vadd.f32 0.0, %v1208
        %v1210 = vpop.f32.mrf.mxu0
        %1211 = vdwg.mxu0
        %v1212 = vld [vmem:[#allocation3] sm:$0xff]
        %v1213 = vld [vmem:[#allocation3 + $0x8] sm:$0xff]
        %v1214 = vld [vmem:[#allocation3 + $0x10] sm:$0xff]
        %v1215 = vld [vmem:[#allocation3 + $0x18] sm:$0xff]
        %v1216 = vld [vmem:[#allocation3 + $0x20] sm:$0xff]
        %v1217 = vld [vmem:[#allocation3 + $0x28] sm:$0xff]
        %v1218 = vld [vmem:[#allocation3 + $0x30] sm:$0xff]
        %v1219 = vld [vmem:[#allocation3 + $0x38] sm:$0xff]
        %v1220 = vpack.c.bf16 %v1213, %v1212
        %v1221 = vpack.c.bf16 %v1215, %v1214
        %v1222 = vpack.c.bf16 %v1217, %v1216
        %v1223 = vpack.c.bf16 %v1219, %v1218
        %v1224 = vld [vmem:[%s525] sm:$0xf]
        %v1225 = vld [vmem:[%s525 + $0x4] sm:$0xf]
        %v1226 = vld [vmem:[%s525 + $0x8] sm:$0xf]
        %v1227 = vld [vmem:[%s525 + $0xc] sm:$0xf]
        %v1228 = vld [vmem:[%s528] sm:$0x1]
        %v1230 = vlaneseq
        %v1231 = vshrl.u32 %v1230, 7
        %v1232 = vsub.s32 0, %v1231
        %v1233 = vrot.slane %v1228, %v1232
        %v1239 = vunpack.c.l.b16 %v1224
        %v1240 = vunpack.c.l.b16 %v1225
        %v1241 = vunpack.c.l.b16 %v1226
        %v1242 = vunpack.c.l.b16 %v1227
        %v1243 = vpack.c.b16 %v1240, %v1239
        %v1244 = vpack.c.b16 %v1242, %v1241
        %v1248 = vsel %vm977, %v1220, 0
        %v1251 = vsel %vm977, %v1221, 0
        %v1254 = vsel %vm977, %v1222, 0
        %v1257 = vsel %vm977, %v1223, 0
        %1259 = vmatprep.subr.bf16.mxu0 0
        %1260 = vmatpush1.bf16.msra.mxu0 0
        %1261 = vmatprep.subr.bf16.mxu0 0
        %1262 = vmatpush1.bf16.msra.mxu0 0
        %1263 = vmatprep.subr.bf16.mxu0 0
        %1264 = vmatpush1.bf16.msra.mxu0 0
        %1265 = vmatprep.subr.bf16.mxu0 0
        %1266 = vmatpush1.bf16.msra.mxu0 0
        %1267 = vmatprep.subr.bf16.mxu0 0
        %1268 = vmatpush1.bf16.msra.mxu0 0
        %1269 = vmatprep.subr.bf16.mxu0 0
        %1270 = vmatpush1.bf16.msra.mxu0 0
        %1271 = vmatprep.subr.bf16.mxu0 0
        %1272 = vmatpush1.bf16.msra.mxu0 %v1244
        %1273 = vmatprep.subr.bf16.mxu0 0
        %1274 = vmatpush1.bf16.msra.mxu0 %v1243
        %1275 = vmatprep.subr.bf16.mxu0 0
        %1276 = vmatpush2.bf16.msra.mxu0 0
        %1277 = vmatprep.subr.bf16.mxu0 0
        %1278 = vmatpush2.bf16.msra.mxu0 0
        %1279 = vmatprep.subr.bf16.mxu0 0
        %1280 = vmatpush2.bf16.msra.mxu0 0
        %1281 = vmatprep.subr.bf16.mxu0 0
        %1282 = vmatpush2.bf16.msra.mxu0 0
        %1283 = vmatprep.subr.bf16.mxu0 0
        %1284 = vmatpush2.bf16.msra.mxu0 0
        %1285 = vmatprep.subr.bf16.mxu0 0
        %1286 = vmatpush2.bf16.msra.mxu0 0
        %1287 = vmatprep.subr.bf16.mxu0 0
        %1288 = vmatpush2.bf16.msra.mxu0 0
        %1289 = vmatprep.subr.bf16.mxu0 0
        %1290 = vmatpush2.bf16.msra.mxu0 0
        %1291 = vmatprep.mubr.bf16.mxu0 0
        %1292 = vmatmul.mubr.bf16.gmra.mxu0 %v1248
        %v1293 = vpop.f32.mrf.mxu0
        %v1294 = vadd.f32 %v1233, %v1293
        %v1295 = vpop.f32.mrf.mxu0
        %v1296 = vpop.f32.mrf.mxu0
        %v1297 = vadd.f32 %v1233, %v1296
        %v1298 = vpop.f32.mrf.mxu0
        %1299 = vmatprep.mubr.bf16.mxu0 0
        %1300 = vmatmul.mubr.bf16.gmra.mxu0 %v1251
        %v1301 = vpop.f32.mrf.mxu0
        %v1302 = vadd.f32 %v1233, %v1301
        %v1303 = vpop.f32.mrf.mxu0
        %v1304 = vpop.f32.mrf.mxu0
        %v1305 = vadd.f32 %v1233, %v1304
        %v1306 = vpop.f32.mrf.mxu0
        %1307 = vmatprep.mubr.bf16.mxu0 0
        %1308 = vmatmul.mubr.bf16.gmra.mxu0 %v1254
        %v1309 = vpop.f32.mrf.mxu0
        %v1310 = vadd.f32 %v1233, %v1309
        %v1311 = vpop.f32.mrf.mxu0
        %v1312 = vpop.f32.mrf.mxu0
        %v1313 = vadd.f32 %v1233, %v1312
        %v1314 = vpop.f32.mrf.mxu0
        %1315 = vmatprep.mubr.bf16.mxu0 0
        %1316 = vmatmul.mubr.bf16.gmra.mxu0 %v1257
        %v1317 = vpop.f32.mrf.mxu0
        %v1318 = vadd.f32 %v1233, %v1317
        %v1319 = vpop.f32.mrf.mxu0
        %v1320 = vpop.f32.mrf.mxu0
        %v1321 = vadd.f32 %v1233, %v1320
        %v1322 = vpop.f32.mrf.mxu0
        %1323 = vdwg.mxu0
        %1332 = vrot.lane.b32.xlu0 %v1182, 96
        %v1333 = vpop.permute.xlu0 %1332
        %1334 = vrot.lane.b32.xlu0 %v1185, 96
        %v1335 = vpop.permute.xlu0 %1334
        %1336 = vrot.lane.b32.xlu0 %v1190, 96
        %v1337 = vpop.permute.xlu0 %1336
        %1338 = vrot.lane.b32.xlu0 %v1193, 96
        %v1339 = vpop.permute.xlu0 %1338
        %1340 = vrot.lane.b32.xlu0 %v1198, 96
        %v1341 = vpop.permute.xlu0 %1340
        %1342 = vrot.lane.b32.xlu0 %v1201, 96
        %v1343 = vpop.permute.xlu0 %1342
        %1344 = vrot.lane.b32.xlu0 %v1206, 96
        %v1345 = vpop.permute.xlu0 %1344
        %1346 = vrot.lane.b32.xlu0 %v1209, 96
        %v1347 = vpop.permute.xlu0 %1346
        %v1356 = vadd.f32 %v1150, %v1333
        %v1357 = vadd.f32 %v1153, %v1335
        %v1358 = vadd.f32 %v1158, %v1337
        %v1359 = vadd.f32 %v1161, %v1339
        %v1360 = vadd.f32 %v1166, %v1341
        %v1361 = vadd.f32 %v1169, %v1343
        %v1362 = vadd.f32 %v1174, %v1345
        %v1363 = vadd.f32 %v1177, %v1347
        %1372 = vrot.lane.b32.xlu0 %v1294, 64
        %v1373 = vpop.permute.xlu0 %1372
        %1374 = vrot.lane.b32.xlu0 %v1297, 64
        %v1375 = vpop.permute.xlu0 %1374
        %1376 = vrot.lane.b32.xlu0 %v1302, 64
        %v1377 = vpop.permute.xlu0 %1376
        %1378 = vrot.lane.b32.xlu0 %v1305, 64
        %v1379 = vpop.permute.xlu0 %1378
        %1380 = vrot.lane.b32.xlu0 %v1310, 64
        %v1381 = vpop.permute.xlu0 %1380
        %1382 = vrot.lane.b32.xlu0 %v1313, 64
        %v1383 = vpop.permute.xlu0 %1382
        %1384 = vrot.lane.b32.xlu0 %v1318, 64
        %v1385 = vpop.permute.xlu0 %1384
        %1386 = vrot.lane.b32.xlu0 %v1321, 64
        %v1387 = vpop.permute.xlu0 %1386
        %v1396 = vadd.f32 %v1356, %v1373
        %v1397 = vadd.f32 %v1357, %v1375
        %v1398 = vadd.f32 %v1358, %v1377
        %v1399 = vadd.f32 %v1359, %v1379
        %v1400 = vadd.f32 %v1360, %v1381
        %v1401 = vadd.f32 %v1361, %v1383
        %v1402 = vadd.f32 %v1362, %v1385
        %v1403 = vadd.f32 %v1363, %v1387
        %v1404 = vxor.u32 %v1396, 2147483648
        %v1405 = vxor.u32 %v1397, 2147483648
        %v1406 = vxor.u32 %v1398, 2147483648
        %v1407 = vxor.u32 %v1399, 2147483648
        %v1408 = vxor.u32 %v1400, 2147483648
        %v1409 = vxor.u32 %v1401, 2147483648
        %v1410 = vxor.u32 %v1402, 2147483648
        %v1411 = vxor.u32 %v1403, 2147483648
        %v1412 = vmul.f32 %v1404, 1.442695
        %v1413 = vpow.pop %v1412
        %v1414 = vmul.f32 %v1405, 1.442695
        %v1415 = vpow.pop %v1414
        %v1416 = vmul.f32 %v1406, 1.442695
        %v1417 = vpow.pop %v1416
        %v1418 = vmul.f32 %v1407, 1.442695
        %v1419 = vpow.pop %v1418
        %v1420 = vmul.f32 %v1408, 1.442695
        %v1421 = vpow.pop %v1420
        %v1422 = vmul.f32 %v1409, 1.442695
        %v1423 = vpow.pop %v1422
        %v1424 = vmul.f32 %v1410, 1.442695
        %v1425 = vpow.pop %v1424
        %v1426 = vmul.f32 %v1411, 1.442695
        %v1427 = vpow.pop %v1426
        %v1428 = vadd.f32 %v1413, 1.0
        %v1429 = vadd.f32 %v1415, 1.0
        %v1430 = vadd.f32 %v1417, 1.0
        %v1431 = vadd.f32 %v1419, 1.0
        %v1432 = vadd.f32 %v1421, 1.0
        %v1433 = vadd.f32 %v1423, 1.0
        %v1434 = vadd.f32 %v1425, 1.0
        %v1435 = vadd.f32 %v1427, 1.0
        %v1436 = vrcp.pop %v1428
        %v1437 = vmul.f32 1.0, %v1436
        %v1438 = vrcp.pop %v1429
        %v1439 = vmul.f32 1.0, %v1438
        %v1440 = vrcp.pop %v1430
        %v1441 = vmul.f32 1.0, %v1440
        %v1442 = vrcp.pop %v1431
        %v1443 = vmul.f32 1.0, %v1442
        %v1444 = vrcp.pop %v1432
        %v1445 = vmul.f32 1.0, %v1444
        %v1446 = vrcp.pop %v1433
        %v1447 = vmul.f32 1.0, %v1446
        %v1448 = vrcp.pop %v1434
        %v1449 = vmul.f32 1.0, %v1448
        %v1450 = vrcp.pop %v1435
        %v1451 = vmul.f32 1.0, %v1450
        %1460 = vrot.lane.b32.xlu0 %v1150, 32
        %v1461 = vpop.permute.xlu0 %1460
        %1462 = vrot.lane.b32.xlu0 %v1153, 32
        %v1463 = vpop.permute.xlu0 %1462
        %1464 = vrot.lane.b32.xlu0 %v1158, 32
        %v1465 = vpop.permute.xlu0 %1464
        %1466 = vrot.lane.b32.xlu0 %v1161, 32
        %v1467 = vpop.permute.xlu0 %1466
        %1468 = vrot.lane.b32.xlu0 %v1166, 32
        %v1469 = vpop.permute.xlu0 %1468
        %1470 = vrot.lane.b32.xlu0 %v1169, 32
        %v1471 = vpop.permute.xlu0 %1470
        %1472 = vrot.lane.b32.xlu0 %v1174, 32
        %v1473 = vpop.permute.xlu0 %1472
        %1474 = vrot.lane.b32.xlu0 %v1177, 32
        %v1475 = vpop.permute.xlu0 %1474
        %v1484 = vmul.f32 %v1437, %v1461
        %v1485 = vmul.f32 %v1439, %v1463
        %v1486 = vmul.f32 %v1441, %v1465
        %v1487 = vmul.f32 %v1443, %v1467
        %v1488 = vmul.f32 %v1445, %v1469
        %v1489 = vmul.f32 %v1447, %v1471
        %v1490 = vmul.f32 %v1449, %v1473
        %v1491 = vmul.f32 %v1451, %v1475
        %v1492 = vpack.c.bf16 %v1485, %v1484
        %v1493 = vpack.c.bf16 %v1487, %v1486
        %v1494 = vpack.c.bf16 %v1489, %v1488
        %v1495 = vpack.c.bf16 %v1491, %v1490
        %v1500 = vunpack.c.l.b16 %v1492
        %v1501 = vunpack.c.h.b16 %v1492
        %v1502 = vunpack.c.l.b16 %v1493
        %v1503 = vunpack.c.h.b16 %v1493
        %v1504 = vunpack.c.l.b16 %v1494
        %v1505 = vunpack.c.h.b16 %v1494
        %v1506 = vunpack.c.l.b16 %v1495
        %v1507 = vunpack.c.h.b16 %v1495
        %v1508 = vpack.c.b16 %v1500, %v1500
        %v1509 = vpack.c.b16 %v1501, %v1501
        %v1510 = vpack.c.b16 %v1502, %v1502
        %v1511 = vpack.c.b16 %v1503, %v1503
        %v1512 = vpack.c.b16 %v1504, %v1504
        %v1513 = vpack.c.b16 %v1505, %v1505
        %v1514 = vpack.c.b16 %v1506, %v1506
        %v1515 = vpack.c.b16 %v1507, %v1507
        %1516 = vrot.lane.b32.xlu0 %v1508, 64
        %v1517 = vpop.permute.xlu0 %1516
        %1518 = vrot.lane.b32.xlu0 %v1509, 64
        %v1519 = vpop.permute.xlu0 %1518
        %1520 = vrot.lane.b32.xlu0 %v1510, 64
        %v1521 = vpop.permute.xlu0 %1520
        %1522 = vrot.lane.b32.xlu0 %v1511, 64
        %v1523 = vpop.permute.xlu0 %1522
        %1524 = vrot.lane.b32.xlu0 %v1512, 64
        %v1525 = vpop.permute.xlu0 %1524
        %1526 = vrot.lane.b32.xlu0 %v1513, 64
        %v1527 = vpop.permute.xlu0 %1526
        %1528 = vrot.lane.b32.xlu0 %v1514, 64
        %v1529 = vpop.permute.xlu0 %1528
        %1530 = vrot.lane.b32.xlu0 %v1515, 64
        %v1531 = vpop.permute.xlu0 %1530
        %vm1540 = vcmask 257024
        %1541 = vst.msk [vmem:[#allocation6] sm:$0xf] %vm1540, %v1517
        %1542 = vst.msk [vmem:[#allocation6 + $0x4] sm:$0xf] %vm1540, %v1519
        %1543 = vst.msk [vmem:[#allocation6 + $0x8] sm:$0xf] %vm1540, %v1521
        %1544 = vst.msk [vmem:[#allocation6 + $0xc] sm:$0xf] %vm1540, %v1523
        %1545 = vst.msk [vmem:[#allocation6 + $0x10] sm:$0xf] %vm1540, %v1525
        %1546 = vst.msk [vmem:[#allocation6 + $0x14] sm:$0xf] %vm1540, %v1527
        %1547 = vst.msk [vmem:[#allocation6 + $0x18] sm:$0xf] %vm1540, %v1529
        %1548 = vst.msk [vmem:[#allocation6 + $0x1c] sm:$0xf] %vm1540, %v1531
        %v1549 = vpack.c.bf16 %v1439, %v1437
        %v1550 = vpack.c.bf16 %v1443, %v1441
        %v1551 = vpack.c.bf16 %v1447, %v1445
        %v1552 = vpack.c.bf16 %v1451, %v1449
        %v1557 = vunpack.c.l.b16 %v1549
        %v1558 = vunpack.c.h.b16 %v1549
        %v1559 = vunpack.c.l.b16 %v1550
        %v1560 = vunpack.c.h.b16 %v1550
        %v1561 = vunpack.c.l.b16 %v1551
        %v1562 = vunpack.c.h.b16 %v1551
        %v1563 = vunpack.c.l.b16 %v1552
        %v1564 = vunpack.c.h.b16 %v1552
        %v1565 = vpack.c.b16 %v1557, %v1557
        %v1566 = vpack.c.b16 %v1558, %v1558
        %v1567 = vpack.c.b16 %v1559, %v1559
        %v1568 = vpack.c.b16 %v1560, %v1560
        %v1569 = vpack.c.b16 %v1561, %v1561
        %v1570 = vpack.c.b16 %v1562, %v1562
        %v1571 = vpack.c.b16 %v1563, %v1563
        %v1572 = vpack.c.b16 %v1564, %v1564
        %1573 = vrot.lane.b32.xlu0 %v1565, 96
        %v1574 = vpop.permute.xlu0 %1573
        %1575 = vrot.lane.b32.xlu0 %v1566, 96
        %v1576 = vpop.permute.xlu0 %1575
        %1577 = vrot.lane.b32.xlu0 %v1567, 96
        %v1578 = vpop.permute.xlu0 %1577
        %1579 = vrot.lane.b32.xlu0 %v1568, 96
        %v1580 = vpop.permute.xlu0 %1579
        %1581 = vrot.lane.b32.xlu0 %v1569, 96
        %v1582 = vpop.permute.xlu0 %1581
        %1583 = vrot.lane.b32.xlu0 %v1570, 96
        %v1584 = vpop.permute.xlu0 %1583
        %1585 = vrot.lane.b32.xlu0 %v1571, 96
        %v1586 = vpop.permute.xlu0 %1585
        %1587 = vrot.lane.b32.xlu0 %v1572, 96
        %v1588 = vpop.permute.xlu0 %1587
        %vm1597 = vcmask 519424
        %1598 = vst.msk [vmem:[#allocation6] sm:$0xf] %vm1597, %v1574
        %1599 = vst.msk [vmem:[#allocation6 + $0x4] sm:$0xf] %vm1597, %v1576
        %1600 = vst.msk [vmem:[#allocation6 + $0x8] sm:$0xf] %vm1597, %v1578
        %1601 = vst.msk [vmem:[#allocation6 + $0xc] sm:$0xf] %vm1597, %v1580
        %1602 = vst.msk [vmem:[#allocation6 + $0x10] sm:$0xf] %vm1597, %v1582
        %1603 = vst.msk [vmem:[#allocation6 + $0x14] sm:$0xf] %vm1597, %v1584
        %1604 = vst.msk [vmem:[#allocation6 + $0x18] sm:$0xf] %vm1597, %v1586
        %1605 = vst.msk [vmem:[#allocation6 + $0x1c] sm:$0xf] %vm1597, %v1588
        %v1606 = vld [vmem:[#allocation5] sm:$0xf]
        %v1607 = vld [vmem:[#allocation5 + $0x4] sm:$0xf]
        %v1608 = vld [vmem:[#allocation5 + $0x8] sm:$0xf]
        %v1609 = vld [vmem:[#allocation5 + $0xc] sm:$0xf]
        %v1610 = vld [vmem:[#allocation6] sm:$0xf]
        %v1611 = vld [vmem:[#allocation6 + $0x4] sm:$0xf]
        %v1612 = vld [vmem:[#allocation6 + $0x8] sm:$0xf]
        %v1613 = vld [vmem:[#allocation6 + $0xc] sm:$0xf]
        %v1614 = vld [vmem:[#allocation6 + $0x10] sm:$0xf]
        %v1615 = vld [vmem:[#allocation6 + $0x14] sm:$0xf]
        %v1616 = vld [vmem:[#allocation6 + $0x18] sm:$0xf]
        %v1617 = vld [vmem:[#allocation6 + $0x1c] sm:$0xf]
        %v1622 = vunpack.c.l.b16 %v1606
        %v1623 = vunpack.c.l.b16 %v1607
        %v1624 = vunpack.c.l.b16 %v1608
        %v1625 = vunpack.c.l.b16 %v1609
        %v1626 = vpack.c.b16 %v1623, %v1622
        %v1627 = vpack.c.b16 %v1625, %v1624
        %v1636 = vunpack.c.l.b16 %v1610
        %v1637 = vunpack.c.l.b16 %v1611
        %v1638 = vunpack.c.l.b16 %v1612
        %v1639 = vunpack.c.l.b16 %v1613
        %v1640 = vunpack.c.l.b16 %v1614
        %v1641 = vunpack.c.l.b16 %v1615
        %v1642 = vunpack.c.l.b16 %v1616
        %v1643 = vunpack.c.l.b16 %v1617
        %v1644 = vpack.c.b16 %v1637, %v1636
        %v1645 = vpack.c.b16 %v1639, %v1638
        %v1646 = vpack.c.b16 %v1641, %v1640
        %v1647 = vpack.c.b16 %v1643, %v1642
        %vm1652 = vcmask 523264
        %v1654 = vsel %vm1652, %v1626, 0
        %v1657 = vsel %vm1652, %v1627, 0
        %1659 = vmatprep.subr.bf16.mxu0 0
        %1660 = vmatpush1.bf16.msra.mxu0 0
        %1661 = vmatprep.subr.bf16.mxu0 0
        %1662 = vmatpush1.bf16.msra.mxu0 0
        %1663 = vmatprep.subr.bf16.mxu0 0
        %1664 = vmatpush1.bf16.msra.mxu0 0
        %1665 = vmatprep.subr.bf16.mxu0 0
        %1666 = vmatpush1.bf16.msra.mxu0 0
        %1667 = vmatprep.subr.bf16.mxu0 0
        %1668 = vmatpush1.bf16.msra.mxu0 %v1647
        %1669 = vmatprep.subr.bf16.mxu0 0
        %1670 = vmatpush1.bf16.msra.mxu0 %v1646
        %1671 = vmatprep.subr.bf16.mxu0 0
        %1672 = vmatpush1.bf16.msra.mxu0 %v1645
        %1673 = vmatprep.subr.bf16.mxu0 0
        %1674 = vmatpush1.bf16.msra.mxu0 %v1644
        %1675 = vmatprep.subr.bf16.mxu0 0
        %1676 = vmatpush2.bf16.msra.mxu0 0
        %1677 = vmatprep.subr.bf16.mxu0 0
        %1678 = vmatpush2.bf16.msra.mxu0 0
        %1679 = vmatprep.subr.bf16.mxu0 0
        %1680 = vmatpush2.bf16.msra.mxu0 0
        %1681 = vmatprep.subr.bf16.mxu0 0
        %1682 = vmatpush2.bf16.msra.mxu0 0
        %1683 = vmatprep.subr.bf16.mxu0 0
        %1684 = vmatpush2.bf16.msra.mxu0 0
        %1685 = vmatprep.subr.bf16.mxu0 0
        %1686 = vmatpush2.bf16.msra.mxu0 0
        %1687 = vmatprep.subr.bf16.mxu0 0
        %1688 = vmatpush2.bf16.msra.mxu0 0
        %1689 = vmatprep.subr.bf16.mxu0 0
        %1690 = vmatpush2.bf16.msra.mxu0 0
        %1691 = vmatprep.mubr.bf16.mxu0 0
        %1692 = vmatmul.mubr.bf16.gmra.mxu0 %v1654
        %v1693 = vpop.f32.mrf.mxu0
        %v1694 = vadd.f32 0.0, %v1693
        %v1695 = vpop.f32.mrf.mxu0
        %v1696 = vpop.f32.mrf.mxu0
        %v1697 = vadd.f32 0.0, %v1696
        %v1698 = vpop.f32.mrf.mxu0
        %1699 = vmatprep.mubr.bf16.mxu0 0
        %1700 = vmatmul.mubr.bf16.gmra.mxu0 %v1657
        %v1701 = vpop.f32.mrf.mxu0
        %v1702 = vadd.f32 0.0, %v1701
        %v1703 = vpop.f32.mrf.mxu0
        %v1704 = vpop.f32.mrf.mxu0
        %v1705 = vadd.f32 0.0, %v1704
        %v1706 = vpop.f32.mrf.mxu0
        %1707 = vdwg.mxu0
        %v1708 = vadd.f32 %v1694, 1e-06
        %v1709 = vadd.f32 %v1697, 1e-06
        %v1710 = vadd.f32 %v1702, 1e-06
        %v1711 = vadd.f32 %v1705, 1e-06
        %v1712 = vrcp.pop %v1708
        %v1713 = vrcp.pop %v1709
        %v1714 = vrcp.pop %v1710
        %v1715 = vrcp.pop %v1711
        %1720 = vrot.lane.b32.xlu0 %v1712, 96
        %v1721 = vpop.permute.xlu0 %1720
        %1722 = vrot.lane.b32.xlu0 %v1713, 96
        %v1723 = vpop.permute.xlu0 %1722
        %1724 = vrot.lane.b32.xlu0 %v1714, 96
        %v1725 = vpop.permute.xlu0 %1724
        %1726 = vrot.lane.b32.xlu0 %v1715, 96
        %v1727 = vpop.permute.xlu0 %1726
        %v1732 = vmul.f32 %v1694, %v1721
        %v1733 = vmul.f32 %v1697, %v1723
        %v1734 = vmul.f32 %v1702, %v1725
        %v1735 = vmul.f32 %v1705, %v1727
        %v1736 = vadd.f32 %v1019, %v1732
        %v1737 = vadd.f32 %v1022, %v1733
        %v1738 = vadd.f32 %v1027, %v1734
        %v1739 = vadd.f32 %v1030, %v1735
        %v1740 = vld [vmem:[#allocation2] sm:$0xff]
        %v1741 = vld [vmem:[#allocation2 + $0x8] sm:$0xff]
        %v1742 = vld [vmem:[#allocation2 + $0x10] sm:$0xff]
        %v1743 = vld [vmem:[#allocation2 + $0x18] sm:$0xff]
        %v1744 = vmax.f32 %v1736, 0.0
        %v1745 = vmax.f32 %v1737, 0.0
        %v1746 = vmax.f32 %v1738, 0.0
        %v1747 = vmax.f32 %v1739, 0.0
        %v1748 = vadd.f32 %v1740, %v1744
        %v1749 = vadd.f32 %v1741, %v1745
        %v1750 = vadd.f32 %v1742, %v1746
        %v1751 = vadd.f32 %v1743, %v1747
        %1752 = vst.msk [vmem:[#allocation2] sm:$0xff] %vm977, %v1748
        %1753 = vst.msk [vmem:[#allocation2 + $0x8] sm:$0xff] %vm977, %v1749
        %1754 = vst.msk [vmem:[#allocation2 + $0x10] sm:$0xff] %vm977, %v1750
        %1755 = vst.msk [vmem:[#allocation2 + $0x18] sm:$0xff] %vm977, %v1751
        %v1756 = vld [vmem:[#allocation3] sm:$0xff]
        %v1757 = vld [vmem:[#allocation3 + $0x8] sm:$0xff]
        %v1758 = vld [vmem:[#allocation3 + $0x10] sm:$0xff]
        %v1759 = vld [vmem:[#allocation3 + $0x18] sm:$0xff]
        %v1760 = vld [vmem:[#allocation3 + $0x20] sm:$0xff]
        %v1761 = vld [vmem:[#allocation3 + $0x28] sm:$0xff]
        %v1762 = vld [vmem:[#allocation3 + $0x30] sm:$0xff]
        %v1763 = vld [vmem:[#allocation3 + $0x38] sm:$0xff]
        %v1764 = vmax.f32 %v1396, 0.0
        %v1765 = vmax.f32 %v1397, 0.0
        %v1766 = vmax.f32 %v1398, 0.0
        %v1767 = vmax.f32 %v1399, 0.0
        %v1768 = vmax.f32 %v1400, 0.0
        %v1769 = vmax.f32 %v1401, 0.0
        %v1770 = vmax.f32 %v1402, 0.0
        %v1771 = vmax.f32 %v1403, 0.0
        %1780 = vrot.lane.b32.xlu0 %v1764, 64
        %v1781 = vpop.permute.xlu0 %1780
        %1782 = vrot.lane.b32.xlu0 %v1765, 64
        %v1783 = vpop.permute.xlu0 %1782
        %1784 = vrot.lane.b32.xlu0 %v1766, 64
        %v1785 = vpop.permute.xlu0 %1784
        %1786 = vrot.lane.b32.xlu0 %v1767, 64
        %v1787 = vpop.permute.xlu0 %1786
        %1788 = vrot.lane.b32.xlu0 %v1768, 64
        %v1789 = vpop.permute.xlu0 %1788
        %1790 = vrot.lane.b32.xlu0 %v1769, 64
        %v1791 = vpop.permute.xlu0 %1790
        %1792 = vrot.lane.b32.xlu0 %v1770, 64
        %v1793 = vpop.permute.xlu0 %1792
        %1794 = vrot.lane.b32.xlu0 %v1771, 64
        %v1795 = vpop.permute.xlu0 %1794
        %v1804 = vadd.f32 %v1756, %v1781
        %v1805 = vadd.f32 %v1757, %v1783
        %v1806 = vadd.f32 %v1758, %v1785
        %v1807 = vadd.f32 %v1759, %v1787
        %v1808 = vadd.f32 %v1760, %v1789
        %v1809 = vadd.f32 %v1761, %v1791
        %v1810 = vadd.f32 %v1762, %v1793
        %v1811 = vadd.f32 %v1763, %v1795
        %1812 = vst.msk [vmem:[#allocation3] sm:$0xff] %vm977, %v1804
        %1813 = vst.msk [vmem:[#allocation3 + $0x8] sm:$0xff] %vm977, %v1805
        %1814 = vst.msk [vmem:[#allocation3 + $0x10] sm:$0xff] %vm977, %v1806
        %1815 = vst.msk [vmem:[#allocation3 + $0x18] sm:$0xff] %vm977, %v1807
        %1816 = vst.msk [vmem:[#allocation3 + $0x20] sm:$0xff] %vm977, %v1808
        %1817 = vst.msk [vmem:[#allocation3 + $0x28] sm:$0xff] %vm977, %v1809
        %1818 = vst.msk [vmem:[#allocation3 + $0x30] sm:$0xff] %vm977, %v1810
        %1819 = vst.msk [vmem:[#allocation3 + $0x38] sm:$0xff] %vm977, %v1811
        %p1820 = scmp.eq.s32.totalorder %s27, 1
        // Predicated region
        $region85: #{tpu_custom_call.1} parent=79 // pred_check
          %p1821 = pneg %p1820
        $region86: #{tpu_custom_call.1} parent=79 // pred_check_branch
          %1823 = sbr.rel (%p1821) target = $region88
        $region87: #{tpu_custom_call.1} parent=79 // pred_region
          %v1824 = vld [vmem:[#allocation2] sm:$0xff]
          %v1825 = vld [vmem:[#allocation2 + $0x8] sm:$0xff]
          %v1826 = vld [vmem:[#allocation2 + $0x10] sm:$0xff]
          %v1827 = vld [vmem:[#allocation2 + $0x18] sm:$0xff]
          %v1828 = vpack.c.bf16 %v1825, %v1824
          %v1829 = vpack.c.bf16 %v1827, %v1826
          %v1830 = vld [vmem:[%s13] sm:$0xf]
          %v1831 = vld [vmem:[%s13 + $0x4] sm:$0xf]
          %v1832 = vld [vmem:[%s13 + $0x8] sm:$0xf]
          %v1833 = vld [vmem:[%s13 + $0xc] sm:$0xf]
          %v1834 = vld [vmem:[%s14] sm:$0x1]
          %v1836 = vlaneseq
          %v1837 = vshrl.u32 %v1836, 7
          %v1838 = vsub.s32 0, %v1837
          %v1839 = vrot.slane %v1834, %v1838
          %v1845 = vunpack.c.l.b16 %v1830
          %v1846 = vunpack.c.l.b16 %v1831
          %v1847 = vunpack.c.l.b16 %v1832
          %v1848 = vunpack.c.l.b16 %v1833
          %v1849 = vpack.c.b16 %v1846, %v1845
          %v1850 = vpack.c.b16 %v1848, %v1847
          %v1854 = vsel %vm977, %v1828, 0
          %v1857 = vsel %vm977, %v1829, 0
          %1859 = vmatprep.subr.bf16.mxu0 0
          %1860 = vmatpush1.bf16.msra.mxu0 0
          %1861 = vmatprep.subr.bf16.mxu0 0
          %1862 = vmatpush1.bf16.msra.mxu0 0
          %1863 = vmatprep.subr.bf16.mxu0 0
          %1864 = vmatpush1.bf16.msra.mxu0 0
          %1865 = vmatprep.subr.bf16.mxu0 0
          %1866 = vmatpush1.bf16.msra.mxu0 0
          %1867 = vmatprep.subr.bf16.mxu0 0
          %1868 = vmatpush1.bf16.msra.mxu0 0
          %1869 = vmatprep.subr.bf16.mxu0 0
          %1870 = vmatpush1.bf16.msra.mxu0 0
          %1871 = vmatprep.subr.bf16.mxu0 0
          %1872 = vmatpush1.bf16.msra.mxu0 %v1850
          %1873 = vmatprep.subr.bf16.mxu0 0
          %1874 = vmatpush1.bf16.msra.mxu0 %v1849
          %1875 = vmatprep.subr.bf16.mxu0 0
          %1876 = vmatpush2.bf16.msra.mxu0 0
          %1877 = vmatprep.subr.bf16.mxu0 0
          %1878 = vmatpush2.bf16.msra.mxu0 0
          %1879 = vmatprep.subr.bf16.mxu0 0
          %1880 = vmatpush2.bf16.msra.mxu0 0
          %1881 = vmatprep.subr.bf16.mxu0 0
          %1882 = vmatpush2.bf16.msra.mxu0 0
          %1883 = vmatprep.subr.bf16.mxu0 0
          %1884 = vmatpush2.bf16.msra.mxu0 0
          %1885 = vmatprep.subr.bf16.mxu0 0
          %1886 = vmatpush2.bf16.msra.mxu0 0
          %1887 = vmatprep.subr.bf16.mxu0 0
          %1888 = vmatpush2.bf16.msra.mxu0 0
          %1889 = vmatprep.subr.bf16.mxu0 0
          %1890 = vmatpush2.bf16.msra.mxu0 0
          %1891 = vmatprep.mubr.bf16.mxu0 0
          %1892 = vmatmul.mubr.bf16.gmra.mxu0 %v1854
          %v1893 = vpop.f32.mrf.mxu0
          %v1894 = vadd.f32 %v1839, %v1893
          %v1895 = vpop.f32.mrf.mxu0
          %v1896 = vpop.f32.mrf.mxu0
          %v1897 = vadd.f32 %v1839, %v1896
          %v1898 = vpop.f32.mrf.mxu0
          %1899 = vmatprep.mubr.bf16.mxu0 0
          %1900 = vmatmul.mubr.bf16.gmra.mxu0 %v1857
          %v1901 = vpop.f32.mrf.mxu0
          %v1902 = vadd.f32 %v1839, %v1901
          %v1903 = vpop.f32.mrf.mxu0
          %v1904 = vpop.f32.mrf.mxu0
          %v1905 = vadd.f32 %v1839, %v1904
          %v1906 = vpop.f32.mrf.mxu0
          %1907 = vdwg.mxu0
          %1908 = vmax.xlane.f32.xlu0 %v1894
          %v1909 = vpop.xlane.xlu0 %1908
          %1910 = vmax.xlane.f32.xlu0 %v1897
          %v1911 = vpop.xlane.xlu0 %1910
          %1912 = vmax.xlane.f32.xlu0 %v1902
          %v1913 = vpop.xlane.xlu0 %1912
          %1914 = vmax.xlane.f32.xlu0 %v1905
          %v1915 = vpop.xlane.xlu0 %1914
          %v1916 = vsub.f32 %v1894, %v1909
          %v1917 = vsub.f32 %v1897, %v1911
          %v1918 = vsub.f32 %v1902, %v1913
          %v1919 = vsub.f32 %v1905, %v1915
          %v1920 = vmul.f32 %v1916, 1.442695
          %v1921 = vpow.pop %v1920
          %v1922 = vmul.f32 %v1917, 1.442695
          %v1923 = vpow.pop %v1922
          %v1924 = vmul.f32 %v1918, 1.442695
          %v1925 = vpow.pop %v1924
          %v1926 = vmul.f32 %v1919, 1.442695
          %v1927 = vpow.pop %v1926
          %1928 = vadd.xlane.f32.xlu0 %v1921
          %v1929 = vpop.xlane.xlu0 %1928
          %1930 = vadd.xlane.f32.xlu0 %v1923
          %v1931 = vpop.xlane.xlu0 %1930
          %1932 = vadd.xlane.f32.xlu0 %v1925
          %v1933 = vpop.xlane.xlu0 %1932
          %1934 = vadd.xlane.f32.xlu0 %v1927
          %v1935 = vpop.xlane.xlu0 %1934
          %v1936 = vlog2.pop %v1929
          %v1937 = vmul.f32 %v1936, 0.6931472
          %v1938 = vlog2.pop %v1931
          %v1939 = vmul.f32 %v1938, 0.6931472
          %v1940 = vlog2.pop %v1933
          %v1941 = vmul.f32 %v1940, 0.6931472
          %v1942 = vlog2.pop %v1935
          %v1943 = vmul.f32 %v1942, 0.6931472
          %v1944 = vsub.f32 %v1916, %v1937
          %v1945 = vsub.f32 %v1917, %v1939
          %v1946 = vsub.f32 %v1918, %v1941
          %v1947 = vsub.f32 %v1919, %v1943
          %1948 = vst [vmem:[#allocation7] sm:$0xff] %v1944
          %1949 = vst [vmem:[#allocation7 + $0x8] sm:$0xff] %v1945
          %1950 = vst [vmem:[#allocation7 + $0x10] sm:$0xff] %v1946
          %1951 = vst [vmem:[#allocation7 + $0x18] sm:$0xff] %v1947
        $region88: #{tpu_custom_call.1} parent=79 // pred_fallthru
          _
        // Predicated region
        $region89: #{tpu_custom_call.1} parent=79 // pred_check
          %p1952 = pneg %p375
        $region90: #{tpu_custom_call.1} parent=79 // pred_check_branch
          %1954 = sbr.rel (%p1952) target = $region92
        $region91: #{tpu_custom_call.1} parent=79 // pred_region
          %s1956 = ssub.s32 512, 512
          %1957 = vsyncadd [#allocation8], %s1956
          %s1958 = sshll.u32 [#allocation7], 4
          %s1959 = int_to_ptr.vmem [resolvable:$true] %s1958
          %1964 = dma.vmem_to_hbm [thread:$0]  %s1959, 512, %s15, [#allocation8], 128, 128, 8
        $region92: #{tpu_custom_call.1} parent=79 // pred_fallthru
          _
        // Predicated region
        $region93: #{tpu_custom_call.1} parent=79 // pred_check
          %p1965 = pneg %p375
        $region94: #{tpu_custom_call.1} parent=79 // pred_check_branch
          %1967 = sbr.rel (%p1965) target = $region96
        $region95: #{tpu_custom_call.1} parent=79 // pred_region
          %1968 = dma.done [#allocation8], 512
        $region96: #{tpu_custom_call.1} parent=79 // pred_fallthru
          _
      $region80: #{tpu_custom_call.1} parent=5 // pred_fallthru
        _
      %p1969 = scmp.le.s32.totalorder 2, %s22
      // Predicated region
      $region97: #{tpu_custom_call.1} parent=5 // pred_check
        %p1970 = pneg %p1969
      $region98: #{tpu_custom_call.1} parent=5 // pred_check_branch
        %1972 = sbr.rel (%p1970) target = $region100
      $region99: #{tpu_custom_call.1} parent=5 // pred_region
        %s1973 = ssub.s32 %s22, 2
      $region100: #{tpu_custom_call.1} parent=5 // pred_fallthru
        _
    $region6: #{tpu_custom_call.1} parent=1 // loop_footer
      %s26 = sadd.s32 1, %s22
    $region7: #{tpu_custom_call.1} parent=1 // loop_footer_branch
      %21 = sbr.rel target = $region3
    $region8: #{tpu_custom_call.1} parent=1 // loop_exit
      _
    %1974 = vsyncpa [#allocation8], 1
    %s1975 = scalar_lea.sflag [#allocation8], 1
    %1976 = vsyncpa %s1975, 1

</llo_original>
